<compile_context>
chip_gen: v7x
topology: tpu7x:2x2x1
jax: 0.10.0
libtpu: 0.0.40
codegen_flags: <defaults>
</compile_context>

<pallas_src>
import functools

import jax
import jax.numpy as jnp
from jax.experimental import pallas as pl
from jax.experimental.pallas import tpu as pltpu


# ----------------------------------------------------------------------------
# Padding math (exactly mirrors Conv1d_same_padding / MaxPool1D_same_padding)
# ----------------------------------------------------------------------------
def _same_pad_amounts(length: int, kernel: int, stride: int):
    out_rows = (length + stride - 1) // stride
    padding_rows = max(0, (out_rows - 1) * stride + kernel - length)
    return padding_rows // 2, padding_rows % 2   # (symmetric half, odd extra right pad)


def _round_up(x: int, m: int) -> int:
    return (x + m - 1) // m * m


# ----------------------------------------------------------------------------
# Fused kernel: in-kernel im2col conv + BN(batch stats) + ReLU + same-pad pool
# ----------------------------------------------------------------------------
def _make_kernel(*, B_blk, Lq, L_conv, C_in, K, Sc, C_pad,
                 Kp, Sp, Lp_pad, p_half, M_total, eps, use_cache):
    # conv-output rows per block; batches are segmented every Lq rows, rows
    # [L_conv, Lq) of each segment are inter-batch "garbage" (masked from stats,
    # never copied to the output).
    M_rows = (B_blk - 1) * Lq + L_conv
    has_garbage = (B_blk > 1) and (Lq > L_conv)

    def conv_block(x_ref, w_ref):
        # K shallow MXU dots: acc[j, :] = sum_k x[Sc*j + k, :] @ W[k]
        def tap(k):
            if Sc == 1:
                t = x_ref[pl.ds(k, M_rows), :]
            else:
                t = x_ref[pl.ds(k, M_rows, Sc), :]
            return t.astype(jnp.bfloat16)

        def w_tap(k):
            return w_ref[k * C_in:(k + 1) * C_in, :].astype(jnp.bfloat16)

        acc = jnp.dot(tap(0), w_tap(0), preferred_element_type=jnp.float32)
        for k in range(1, K):
            acc = acc + jnp.dot(tap(k), w_tap(k), preferred_element_type=jnp.float32)
        return acc                                   # (M_rows, C_pad) f32, bias-free

    def kernel(x_ref, w_ref, p_ref, o_ref, stat_ref, ybuf_ref, *cache):
        cache_ref = cache[0] if use_cache else None
        ph = pl.program_id(0)                        # 0 = stats pass, 1 = apply pass
        b = pl.program_id(1)                         # batch block

        @pl.when(jnp.logical_and(ph == 0, b == 0))
        def _init():
            stat_ref[...] = jnp.zeros_like(stat_ref)
            # Pool padding rows: written ONCE here (post-ReLU y >= 0 and every
            # pool window covers at least one real element, so zero padding is
            # exactly equivalent to PyTorch's -inf/0 padding).
            ybuf_ref[...] = jnp.zeros_like(ybuf_ref)

        # ---- phase 0: conv + one-pass BN statistics (bias-free -> no bias-
        #      induced E[x^2]-E[x]^2 cancellation; zero-padded batch rows
        #      contribute exactly zero, so only garbage rows need masking) ----
        @pl.when(ph == 0)
        def _stats():
            acc = conv_block(x_ref, w_ref)
            if use_cache:
                cache_ref[b] = acc
            if has_garbage:
                row = jax.lax.broadcasted_iota(jnp.int32, (M_rows, C_pad), 0)
                am = jnp.where((row % Lq) < L_conv, acc, 0.0)
            else:
                am = acc
            stat_ref[0:1, :] += jnp.sum(am, axis=0, keepdims=True)
            stat_ref[1:2, :] += jnp.sum(am * am, axis=0, keepdims=True)

        # ---- fold BN into one scale/shift, computed once for all blocks ----
        @pl.when(jnp.logical_and(ph == 1, b == 0))
        def _finalize():
            inv_m = 1.0 / float(M_total)
            mean = stat_ref[0:1, :] * inv_m
            var = stat_ref[1:2, :] * inv_m - mean * mean       # biased variance
            scale = p_ref[0:1, :] * jax.lax.rsqrt(var + eps)   # gamma * rsqrt (EUP)
            stat_ref[1:2, :] = p_ref[1:2, :] - mean * scale    # shift = beta - mean*scale
            stat_ref[0:1, :] = scale

        # ---- phase 1: folded BN + ReLU + same-padding max-pool ----
        @pl.when(ph == 1)
        def _apply():
            acc = cache_ref[b] if use_cache else conv_block(x_ref, w_ref)
            scale = stat_ref[0:1, :]
            shift = stat_ref[1:2, :]
            y = jnp.maximum(acc * scale + shift, 0.0)          # (M_rows, C_pad)

            def window(k):
                if Sp == 1:
                    return ybuf_ref[pl.ds(k, Lp_pad), :]
                return ybuf_ref[pl.ds(k, Lp_pad, Sp), :]

            for bb in range(B_blk):
                ybuf_ref[p_half:p_half + L_conv, :] = y[bb * Lq:bb * Lq + L_conv, :]
                pooled = window(0)
                for k in range(1, Kp):
                    pooled = jnp.maximum(pooled, window(k))
                # one dense (Lp_pad, 128) bf16 store per batch element
                o_ref[bb, :, :] = pooled.astype(o_ref.dtype)

    return kernel


# ----------------------------------------------------------------------------
# Wrapper: geometry, thin layout glue, VMEM budgeting, pallas_call
# ----------------------------------------------------------------------------
@functools.partial(jax.jit,
                   static_argnames=("conv_stride", "pool_kernel", "pool_stride", "eps"))
def my_conv1d_forward(x, weight, bias, gamma, beta,
                      conv_stride=1, pool_kernel=2, pool_stride=None, eps=1e-5):
    """x: (N, C_in, L); weight: (C_out, C_in, K); bias/gamma/beta: (C_out,)."""
    # NOTE: the conv bias cancels exactly in train-mode BatchNorm (it shifts
    # both the activations and the batch mean), so it is not needed in-kernel.
    del bias
    N, C_in, L = x.shape
    C_out, _, K = weight.shape
    Sc = int(conv_stride)

    # Conv1d_same_padding geometry
    c_half, c_odd = _same_pad_amounts(L, K, Sc)
    L_pad = L + 2 * c_half + c_odd
    L_conv = (L_pad - K) // Sc + 1

    # MaxPool1D_same_padding geometry
    Kp = int(pool_kernel)
    Sp = Kp if pool_stride is None else int(pool_stride)
    p_half, p_odd = _same_pad_amounts(L_conv, Kp, Sp)
    Lp_out = (L_conv + p_odd + 2 * p_half - Kp) // Sp + 1

    # Block / layout geometry
    KC = K * C_in
    C_pad = _round_up(C_out, 128)                   # lane-dense channel axis
    B_blk = max(1, min(N, -(-512 // L_conv)))       # fold batches until M ~ 512 rows
    N_pad = _round_up(N, B_blk)
    NB = N_pad // B_blk
    Lq = _round_up(-(-L_pad // Sc), 8)              # per-batch output segment (aligned)
    L_seg = Lq * Sc                                 # per-batch input segment (>= L_pad)
    M_rows = (B_blk - 1) * Lq + L_conv
    Lp_pad = _round_up(Lp_out, 16)                  # bf16 tile -> fully dense out stores
    L_buf = _round_up((Lp_pad - 1) * Sp + Kp, 8)    # pool buffer length
    M_total = N * L_conv                            # BatchNorm1d reduces over (N, L)

    # ---- thin layout glue (no K-times im2col duplication), plain XLA ----
    x_nlc = jnp.transpose(x, (0, 2, 1)).astype(jnp.float32)             # (N, L, C_in)
    x_seg = jnp.pad(x_nlc, ((0, N_pad - N),
                            (c_half, (L_seg - L) - c_half),
                            (0, 0)))                                    # (N_pad, L_seg, C_in)
    x_flat = x_seg.reshape(N_pad * L_seg, C_in)

    w_packed = jnp.transpose(weight, (2, 1, 0)).reshape(KC, C_out).astype(jnp.float32)
    w_packed = jnp.pad(w_packed, ((0, 0), (0, C_pad - C_out)))          # (KC, C_pad)

    params = jnp.zeros((2, C_pad), jnp.float32)
    params = params.at[0, :C_out].set(gamma.astype(jnp.float32))        # BN weight
    params = params.at[1, :C_out].set(beta.astype(jnp.float32))         # BN bias

    # ---- generation-aware VMEM budget: v7x 64 MiB, v5e/v6e 128 MiB ----
    bytes_x_blk = B_blk * L_seg * C_in * 4
    bytes_w = KC * C_pad * 4
    bytes_params = 2 * C_pad * 4
    bytes_out_blk = B_blk * Lp_pad * C_pad * 2
    bytes_ybuf = L_buf * C_pad * 4
    bytes_stat = 2 * C_pad * 4
    bytes_acc = M_rows * C_pad * 4
    bytes_cache = NB * M_rows * C_pad * 4

    total_vmem = 64 << 20                           # conservative default (v7x per-core)
    try:
        info_fn = getattr(pltpu, "get_tpu_info", None)
        if info_fn is not None:
            total_vmem = getattr(info_fn(), "vmem_capacity_bytes", None) or total_vmem
    except Exception:
        pass
    budget = min(total_vmem * 3 // 4, 100 << 20)
    fixed = (2 * bytes_x_blk + bytes_w + bytes_params + 2 * bytes_out_blk
             + bytes_ybuf + bytes_stat + 2 * bytes_acc)
    use_cache = (fixed + bytes_cache) <= budget     # else fall back to phase-1 recompute
    vmem_limit = int(min(budget,
                         max(32 << 20,
                             fixed + (bytes_cache if use_cache else 0) + (4 << 20))))

    kernel = _make_kernel(B_blk=B_blk, Lq=Lq, L_conv=L_conv, C_in=C_in, K=K, Sc=Sc,
                          C_pad=C_pad, Kp=Kp, Sp=Sp, Lp_pad=Lp_pad, p_half=p_half,
                          M_total=M_total, eps=float(eps), use_cache=use_cache)

    scratch = [pltpu.VMEM((2, C_pad), jnp.float32),      # BN sums -> folded scale/shift
               pltpu.VMEM((L_buf, C_pad), jnp.float32)]  # pool-padded activation buffer
    if use_cache:
        scratch.append(pltpu.VMEM((NB, M_rows, C_pad), jnp.float32))  # conv activations

    if use_cache:
        x_map = lambda ph, b: (b * (1 - ph), 0)          # phase 1 never re-streams x
    else:
        x_map = lambda ph, b: (b, 0)

    out_padded = pl.pallas_call(
        kernel,
        out_shape=jax.ShapeDtypeStruct((N_pad, Lp_pad, C_pad), jnp.bfloat16),
        grid_spec=pltpu.PrefetchScalarGridSpec(
            num_scalar_prefetch=0,
            # grid = (phase, batch block): phase 0 accumulates BN batch stats
            # (and fills the activation cache), phase 1 applies them.  Stats
            # couple all blocks -> both axes stay "arbitrary".
            grid=(2, NB),
            in_specs=[
                pl.BlockSpec((B_blk * L_seg, C_in), x_map),
                pl.BlockSpec((KC, C_pad), lambda ph, b: (0, 0)),
                pl.BlockSpec((2, C_pad), lambda ph, b: (0, 0)),
            ],
            # Output is only written in phase 1; park it on block 0 during
            # phase 0 so no block is flushed before its real data is written.
            # (Relies on sequential 'arbitrary' grid order on one core.)
            out_specs=pl.BlockSpec((B_blk, Lp_pad, C_pad),
                                   lambda ph, b: (ph * b, 0, 0)),
            scratch_shapes=scratch,
        ),
        compiler_params=pltpu.CompilerParams(
            dimension_semantics=("arbitrary", "arbitrary"),
            vmem_limit_bytes=vmem_limit,
        ),
    )(x_flat, w_packed, params)

    # drop padded batches / rows / channels, back to PyTorch layout (N, C_out, Lp_out)
    out = out_padded[:N, :Lp_out, :C_out].astype(jnp.float32)
    return jnp.transpose(out, (0, 2, 1))


# ----------------------------------------------------------------------------
# Pure-JAX reference (independent of the kernel) for the sanity check
# ----------------------------------------------------------------------------
def ref_forward(x, weight, bias, gamma, beta,
                conv_stride=1, pool_kernel=2, pool_stride=None, eps=1e-5):
    N, C_in, L = x.shape
    C_out, _, K = weight.shape
    Sc = int(conv_stride)
    c_half, c_odd = _same_pad_amounts(L, K, Sc)
    xp = jnp.pad(x, ((0, 0), (0, 0), (c_half, c_half + c_odd)))
    y = jax.lax.conv_general_dilated(
        xp, weight, window_strides=(Sc,), padding=[(0, 0)],
        dimension_numbers=("NCH", "OIH", "NCH"),
        precision=jax.lax.Precision.HIGHEST)
    y = y + bias[None, :, None]
    mean = jnp.mean(y, axis=(0, 2), keepdims=True)
    var = jnp.mean((y - mean) ** 2, axis=(0, 2), keepdims=True)
    y = (y - mean) / jnp.sqrt(var + eps) * gamma[None, :, None] + beta[None, :, None]
    y = jnp.maximum(y, 0.0)

    L_conv = y.shape[2]
    Kp = int(pool_kernel)
    Sp = Kp if pool_stride is None else int(pool_stride)
    p_half, p_odd = _same_pad_amounts(L_conv, Kp, Sp)
    y = jnp.pad(y, ((0, 0), (0, 0), (0, p_odd)), constant_values=0.0)
    y = jnp.pad(y, ((0, 0), (0, 0), (p_half, p_half)), constant_values=-jnp.inf)
    return jax.lax.reduce_window(
        y, -jnp.inf, jax.lax.max,
        window_dimensions=(1, 1, Kp), window_strides=(1, 1, Sp), padding="VALID")


# ----------------------------------------------------------------------------
if __name__ == "__main__":
    # myConv1D(in_channels=8, out_channels=16, conv_kernel_size=5,
    #          pool_kernel_size=3, conv_stride=1, pool_stride=None)
    N, C_in, L = 4, 8, 32
    C_out, K = 16, 5
    conv_s, pool_k, pool_s = 1, 3, None

    key = jax.random.PRNGKey(0)
    kx, kw, kb, kg, kbe = jax.random.split(key, 5)
    x = jax.random.normal(kx, (N, C_in, L), jnp.float32)
    weight = jax.random.normal(kw, (C_out, C_in, K), jnp.float32) * 0.1
    bias = jax.random.normal(kb, (C_out,), jnp.float32) * 0.1
    gamma = 1.0 + 0.1 * jax.random.normal(kg, (C_out,), jnp.float32)
    beta = 0.1 * jax.random.normal(kbe, (C_out,), jnp.float32)
    # TODO(synk): BatchNorm1d running_mean/running_var buffer updates (a training
    # side effect) are not modeled; they do not affect the forward output.

    out = my_conv1d_forward(x, weight, bias, gamma, beta,
                            conv_stride=conv_s, pool_kernel=pool_k, pool_stride=pool_s)
    out = jax.block_until_ready(out)

    ref = ref_forward(x, weight, bias, gamma, beta,
                      conv_stride=conv_s, pool_kernel=pool_k, pool_stride=pool_s)
    assert out.shape == ref.shape, (out.shape, ref.shape)
    # bf16 matmul inputs + bf16 output storage vs. an f32 HIGHEST reference.
    max_err = float(jnp.max(jnp.abs(out - ref)))
    assert jnp.allclose(out, ref, atol=3e-2, rtol=3e-2), max_err
    print("KERNEL_OK")
</pallas_src>

<mosaic_0001>
module attributes {stable_mosaic.version = 11 : i64} {
  func.func @kernel(%arg0: i32, %arg1: i32, %arg2: memref<160x8xf32, #tpu.memory_space<vmem>>, %arg3: memref<40x128xf32, #tpu.memory_space<vmem>>, %arg4: memref<2x128xf32, #tpu.memory_space<vmem>>, %arg5: memref<4x16x128xbf16, #tpu.memory_space<vmem>>, %arg6: memref<2x128xf32, #tpu.memory_space<vmem>>, %arg7: memref<48x128xf32, #tpu.memory_space<vmem>>, %arg8: memref<1x152x128xf32, #tpu.memory_space<vmem>>) attributes {dimension_semantics = [#tpu.dimension_semantics<arbitrary>, #tpu.dimension_semantics<arbitrary>], iteration_bounds = array<i64: 2, 1>, scalar_prefetch = 0 : i64, scratch_operands = 3 : i64, tpu.core_type = #tpu.core_type<tc>, window_params = [{transform_indices = @transform_0, window_bounds = array<i64: 160, 8>}, {pipeline_mode = #tpu.pipeline_mode<synchronous>, transform_indices = @transform_1, window_bounds = array<i64: 40, 128>}, {pipeline_mode = #tpu.pipeline_mode<synchronous>, transform_indices = @transform_2, window_bounds = array<i64: 2, 128>}, {transform_indices = @transform_3, window_bounds = array<i64: 4, 16, 128>}]} {
    %c0_i32 = arith.constant 0 : i32
    %0 = arith.cmpi eq, %arg0, %c0_i32 : i32
    %c0_i32_0 = arith.constant 0 : i32
    %1 = arith.cmpi eq, %arg1, %c0_i32_0 : i32
    %2 = arith.andi %0, %1 : i1
    %3 = arith.extui %2 : i1 to i32
    %c0_i32_1 = arith.constant 0 : i32
    %4 = arith.cmpi ne, %3, %c0_i32_1 : i32
    scf.if %4 {
      %cst = arith.constant 0.000000e+00 : f32
      %16 = vector.broadcast %cst : f32 to vector<2x128xf32>
      %c0 = arith.constant 0 : index
      %c0_8 = arith.constant 0 : index
      %17 = vector.load %arg6[%c0, %c0_8] : memref<2x128xf32, #tpu.memory_space<vmem>>, vector<2x128xf32>
      tpu.vector_store %arg6[%c0, %c0_8], %16 {strides = array<i32>} : memref<2x128xf32, #tpu.memory_space<vmem>>, vector<2x128xf32>,
      %cst_9 = arith.constant 0.000000e+00 : f32
      %18 = vector.broadcast %cst_9 : f32 to vector<48x128xf32>
      %c0_10 = arith.constant 0 : index
      %c0_11 = arith.constant 0 : index
      %19 = vector.load %arg7[%c0_10, %c0_11] : memref<48x128xf32, #tpu.memory_space<vmem>>, vector<48x128xf32>
      tpu.vector_store %arg7[%c0_10, %c0_11], %18 {strides = array<i32>} : memref<48x128xf32, #tpu.memory_space<vmem>>, vector<48x128xf32>,
    } else {
    }
    %c0_i32_2 = arith.constant 0 : i32
    %5 = arith.cmpi eq, %arg0, %c0_i32_2 : i32
    %6 = arith.extui %5 : i1 to i32
    %c0_i32_3 = arith.constant 0 : i32
    %7 = arith.cmpi ne, %6, %c0_i32_3 : i32
    scf.if %7 {
      %c0 = arith.constant 0 : index
      %c0_8 = arith.constant 0 : index
      %16 = vector.load %arg2[%c0, %c0_8] : memref<160x8xf32, #tpu.memory_space<vmem>>, vector<152x8xf32>
      %17 = arith.truncf %16 : vector<152x8xf32> to vector<152x8xbf16>
      %c0_9 = arith.constant 0 : index
      %c0_10 = arith.constant 0 : index
      %18 = vector.load %arg3[%c0_9, %c0_10] : memref<40x128xf32, #tpu.memory_space<vmem>>, vector<8x128xf32>
      %19 = arith.truncf %18 : vector<8x128xf32> to vector<8x128xbf16>
      %cst = arith.constant dense<0.000000e+00> : vector<152x128xf32>
      %20 = tpu.matmul %17, %19, %cst {dimension_numbers = #tpu.dot_dimension_numbers<[1], [0], [0], [1], [0, 0, 1, 1], [], []>} : vector<152x8xbf16>, vector<8x128xbf16>, vector<152x128xf32> -> vector<152x128xf32>
      %c1 = arith.constant 1 : index
      %c0_11 = arith.constant 0 : index
      %21 = vector.load %arg2[%c1, %c0_11] : memref<160x8xf32, #tpu.memory_space<vmem>>, vector<152x8xf32>
      %22 = arith.truncf %21 : vector<152x8xf32> to vector<152x8xbf16>
      %c8 = arith.constant 8 : index
      %c0_12 = arith.constant 0 : index
      %23 = vector.load %arg3[%c8, %c0_12] : memref<40x128xf32, #tpu.memory_space<vmem>>, vector<8x128xf32>
      %24 = arith.truncf %23 : vector<8x128xf32> to vector<8x128xbf16>
      %cst_13 = arith.constant dense<0.000000e+00> : vector<152x128xf32>
      %25 = tpu.matmul %22, %24, %cst_13 {dimension_numbers = #tpu.dot_dimension_numbers<[1], [0], [0], [1], [0, 0, 1, 1], [], []>} : vector<152x8xbf16>, vector<8x128xbf16>, vector<152x128xf32> -> vector<152x128xf32>
      %26 = arith.addf %20, %25 : vector<152x128xf32>
      %c2 = arith.constant 2 : index
      %c0_14 = arith.constant 0 : index
      %27 = vector.load %arg2[%c2, %c0_14] : memref<160x8xf32, #tpu.memory_space<vmem>>, vector<152x8xf32>
      %28 = arith.truncf %27 : vector<152x8xf32> to vector<152x8xbf16>
      %c16 = arith.constant 16 : index
      %c0_15 = arith.constant 0 : index
      %29 = vector.load %arg3[%c16, %c0_15] : memref<40x128xf32, #tpu.memory_space<vmem>>, vector<8x128xf32>
      %30 = arith.truncf %29 : vector<8x128xf32> to vector<8x128xbf16>
      %cst_16 = arith.constant dense<0.000000e+00> : vector<152x128xf32>
      %31 = tpu.matmul %28, %30, %cst_16 {dimension_numbers = #tpu.dot_dimension_numbers<[1], [0], [0], [1], [0, 0, 1, 1], [], []>} : vector<152x8xbf16>, vector<8x128xbf16>, vector<152x128xf32> -> vector<152x128xf32>
      %32 = arith.addf %26, %31 : vector<152x128xf32>
      %c3 = arith.constant 3 : index
      %c0_17 = arith.constant 0 : index
      %33 = vector.load %arg2[%c3, %c0_17] : memref<160x8xf32, #tpu.memory_space<vmem>>, vector<152x8xf32>
      %34 = arith.truncf %33 : vector<152x8xf32> to vector<152x8xbf16>
      %c24 = arith.constant 24 : index
      %c0_18 = arith.constant 0 : index
      %35 = vector.load %arg3[%c24, %c0_18] : memref<40x128xf32, #tpu.memory_space<vmem>>, vector<8x128xf32>
      %36 = arith.truncf %35 : vector<8x128xf32> to vector<8x128xbf16>
      %cst_19 = arith.constant dense<0.000000e+00> : vector<152x128xf32>
      %37 = tpu.matmul %34, %36, %cst_19 {dimension_numbers = #tpu.dot_dimension_numbers<[1], [0], [0], [1], [0, 0, 1, 1], [], []>} : vector<152x8xbf16>, vector<8x128xbf16>, vector<152x128xf32> -> vector<152x128xf32>
      %38 = arith.addf %32, %37 : vector<152x128xf32>
      %c4 = arith.constant 4 : index
      %c0_20 = arith.constant 0 : index
      %39 = vector.load %arg2[%c4, %c0_20] : memref<160x8xf32, #tpu.memory_space<vmem>>, vector<152x8xf32>
      %40 = arith.truncf %39 : vector<152x8xf32> to vector<152x8xbf16>
      %c32 = arith.constant 32 : index
      %c0_21 = arith.constant 0 : index
      %41 = vector.load %arg3[%c32, %c0_21] : memref<40x128xf32, #tpu.memory_space<vmem>>, vector<8x128xf32>
      %42 = arith.truncf %41 : vector<8x128xf32> to vector<8x128xbf16>
      %cst_22 = arith.constant dense<0.000000e+00> : vector<152x128xf32>
      %43 = tpu.matmul %40, %42, %cst_22 {dimension_numbers = #tpu.dot_dimension_numbers<[1], [0], [0], [1], [0, 0, 1, 1], [], []>} : vector<152x8xbf16>, vector<8x128xbf16>, vector<152x128xf32> -> vector<152x128xf32>
      %44 = arith.addf %38, %43 : vector<152x128xf32>
      %45 = arith.index_cast %arg1 : i32 to index
      %c0_23 = arith.constant 0 : index
      %c0_24 = arith.constant 0 : index
      %46 = vector.load %arg8[%45, %c0_23, %c0_24] : memref<1x152x128xf32, #tpu.memory_space<vmem>>, vector<1x152x128xf32>
      %47 = vector.shape_cast %46 : vector<1x152x128xf32> to vector<152x128xf32>
      %48 = vector.shape_cast %44 : vector<152x128xf32> to vector<1x152x128xf32>
      tpu.vector_store %arg8[%45, %c0_23, %c0_24], %48 {strides = array<i32>} : memref<1x152x128xf32, #tpu.memory_space<vmem>>, vector<1x152x128xf32>,
      %49 = tpu.iota {dimensions = array<i32: 0>} : vector<152x128xi32>
      %c40_i32 = arith.constant 40 : i32
      %c0_i32_25 = arith.constant 0 : i32
      %50 = arith.cmpi eq, %c40_i32, %c0_i32_25 : i32
      %c1_i32_26 = arith.constant 1 : i32
      %51 = arith.select %50, %c1_i32_26, %c40_i32 : i32
      %52 = vector.broadcast %51 : i32 to vector<152x128xi32>
      %53 = arith.remsi %49, %52 : vector<152x128xi32>
      %c0_i32_27 = arith.constant 0 : i32
      %54 = vector.broadcast %c0_i32_27 : i32 to vector<152x128xi32>
      %55 = arith.cmpi ne, %53, %54 : vector<152x128xi32>
      %c0_i32_28 = arith.constant 0 : i32
      %56 = vector.broadcast %c0_i32_28 : i32 to vector<152x128xi32>
      %57 = arith.cmpi slt, %53, %56 : vector<152x128xi32>
      %c0_i32_29 = arith.constant 0 : i32
      %58 = arith.cmpi slt, %51, %c0_i32_29 : i32
      %59 = vector.broadcast %58 : i1 to vector<152x128xi1>
      %60 = vector.broadcast %59 : vector<152x128xi1> to vector<152x128xi1>
      %61 = arith.xori %57, %60 : vector<152x128xi1>
      %62 = arith.andi %61, %55 : vector<152x128xi1>
      %63 = vector.broadcast %51 : i32 to vector<152x128xi32>
      %64 = arith.addi %53, %63 : vector<152x128xi32>
      %65 = arith.select %62, %64, %53 : vector<152x128xi1>, vector<152x128xi32>
      %c32_i32 = arith.constant 32 : i32
      %66 = vector.broadcast %c32_i32 : i32 to vector<152x128xi32>
      %67 = arith.cmpi slt, %65, %66 : vector<152x128xi32>
      %cst_30 = arith.constant 0.000000e+00 : f32
      %68 = vector.broadcast %cst_30 : f32 to vector<152x128xf32>
      %69 = arith.select %67, %44, %68 : vector<152x128xi1>, vector<152x128xf32>
      %c0_31 = arith.constant 0 : index
      %c0_32 = arith.constant 0 : index
      %70 = vector.load %arg6[%c0_31, %c0_32] : memref<2x128xf32, #tpu.memory_space<vmem>>, vector<1x128xf32>
      %cst_33 = arith.constant dense<0.000000e+00> : vector<128xf32>
      %71 = vector.multi_reduction <add>, %69, %cst_33 [0] : vector<152x128xf32> to vector<128xf32>
      %72 = vector.shape_cast %71 : vector<128xf32> to vector<1x128xf32>
      %73 = arith.addf %70, %72 : vector<1x128xf32>
      %c0_34 = arith.constant 0 : index
      %c0_35 = arith.constant 0 : index
      %74 = vector.load %arg6[%c0_34, %c0_35] : memref<2x128xf32, #tpu.memory_space<vmem>>, vector<1x128xf32>
      tpu.vector_store %arg6[%c0_34, %c0_35], %73 {strides = array<i32>} : memref<2x128xf32, #tpu.memory_space<vmem>>, vector<1x128xf32>,
      %c1_36 = arith.constant 1 : index
      %c0_37 = arith.constant 0 : index
      %75 = vector.load %arg6[%c1_36, %c0_37] : memref<2x128xf32, #tpu.memory_space<vmem>>, vector<1x128xf32>
      %76 = arith.mulf %69, %69 : vector<152x128xf32>
      %cst_38 = arith.constant dense<0.000000e+00> : vector<128xf32>
      %77 = vector.multi_reduction <add>, %76, %cst_38 [0] : vector<152x128xf32> to vector<128xf32>
      %78 = vector.shape_cast %77 : vector<128xf32> to vector<1x128xf32>
      %79 = arith.addf %75, %78 : vector<1x128xf32>
      %c1_39 = arith.constant 1 : index
      %c0_40 = arith.constant 0 : index
      %80 = vector.load %arg6[%c1_39, %c0_40] : memref<2x128xf32, #tpu.memory_space<vmem>>, vector<1x128xf32>
      tpu.vector_store %arg6[%c1_39, %c0_40], %79 {strides = array<i32>} : memref<2x128xf32, #tpu.memory_space<vmem>>, vector<1x128xf32>,
    } else {
    }
    %c1_i32 = arith.constant 1 : i32
    %8 = arith.cmpi eq, %arg0, %c1_i32 : i32
    %c0_i32_4 = arith.constant 0 : i32
    %9 = arith.cmpi eq, %arg1, %c0_i32_4 : i32
    %10 = arith.andi %8, %9 : i1
    %11 = arith.extui %10 : i1 to i32
    %c0_i32_5 = arith.constant 0 : i32
    %12 = arith.cmpi ne, %11, %c0_i32_5 : i32
    scf.if %12 {
      %c0 = arith.constant 0 : index
      %c0_8 = arith.constant 0 : index
      %16 = vector.load %arg6[%c0, %c0_8] : memref<2x128xf32, #tpu.memory_space<vmem>>, vector<1x128xf32>
      %cst = arith.constant 7.812500e-03 : f32
      %17 = vector.broadcast %cst : f32 to vector<1x128xf32>
      %18 = arith.mulf %16, %17 : vector<1x128xf32>
      %c1 = arith.constant 1 : index
      %c0_9 = arith.constant 0 : index
      %19 = vector.load %arg6[%c1, %c0_9] : memref<2x128xf32, #tpu.memory_space<vmem>>, vector<1x128xf32>
      %cst_10 = arith.constant 7.812500e-03 : f32
      %20 = vector.broadcast %cst_10 : f32 to vector<1x128xf32>
      %21 = arith.mulf %19, %20 : vector<1x128xf32>
      %22 = arith.mulf %18, %18 : vector<1x128xf32>
      %23 = arith.subf %21, %22 : vector<1x128xf32>
      %c0_11 = arith.constant 0 : index
      %c0_12 = arith.constant 0 : index
      %24 = vector.load %arg4[%c0_11, %c0_12] : memref<2x128xf32, #tpu.memory_space<vmem>>, vector<1x128xf32>
      %cst_13 = arith.constant 9.99999974E-6 : f32
      %25 = vector.broadcast %cst_13 : f32 to vector<1x128xf32>
      %26 = arith.addf %23, %25 : vector<1x128xf32>
      %27 = math.rsqrt %26 : vector<1x128xf32>
      %28 = arith.mulf %24, %27 : vector<1x128xf32>
      %c1_14 = arith.constant 1 : index
      %c0_15 = arith.constant 0 : index
      %29 = vector.load %arg4[%c1_14, %c0_15] : memref<2x128xf32, #tpu.memory_space<vmem>>, vector<1x128xf32>
      %30 = arith.mulf %18, %28 : vector<1x128xf32>
      %31 = arith.subf %29, %30 : vector<1x128xf32>
      %c1_16 = arith.constant 1 : index
      %c0_17 = arith.constant 0 : index
      %32 = vector.load %arg6[%c1_16, %c0_17] : memref<2x128xf32, #tpu.memory_space<vmem>>, vector<1x128xf32>
      tpu.vector_store %arg6[%c1_16, %c0_17], %31 {strides = array<i32>} : memref<2x128xf32, #tpu.memory_space<vmem>>, vector<1x128xf32>,
      %c0_18 = arith.constant 0 : index
      %c0_19 = arith.constant 0 : index
      %33 = vector.load %arg6[%c0_18, %c0_19] : memref<2x128xf32, #tpu.memory_space<vmem>>, vector<1x128xf32>
      tpu.vector_store %arg6[%c0_18, %c0_19], %28 {strides = array<i32>} : memref<2x128xf32, #tpu.memory_space<vmem>>, vector<1x128xf32>,
    } else {
    }
    %c1_i32_6 = arith.constant 1 : i32
    %13 = arith.cmpi eq, %arg0, %c1_i32_6 : i32
    %14 = arith.extui %13 : i1 to i32
    %c0_i32_7 = arith.constant 0 : i32
    %15 = arith.cmpi ne, %14, %c0_i32_7 : i32
    scf.if %15 {
      %16 = arith.index_cast %arg1 : i32 to index
      %c0 = arith.constant 0 : index
      %c0_8 = arith.constant 0 : index
      %17 = vector.load %arg8[%16, %c0, %c0_8] : memref<1x152x128xf32, #tpu.memory_space<vmem>>, vector<1x152x128xf32>
      %18 = vector.shape_cast %17 : vector<1x152x128xf32> to vector<152x128xf32>
      %c0_9 = arith.constant 0 : index
      %c0_10 = arith.constant 0 : index
      %19 = vector.load %arg6[%c0_9, %c0_10] : memref<2x128xf32, #tpu.memory_space<vmem>>, vector<1x128xf32>
      %c1 = arith.constant 1 : index
      %c0_11 = arith.constant 0 : index
      %20 = vector.load %arg6[%c1, %c0_11] : memref<2x128xf32, #tpu.memory_space<vmem>>, vector<1x128xf32>
      %21 = vector.broadcast %19 : vector<1x128xf32> to vector<152x128xf32>
      %22 = arith.mulf %18, %21 : vector<152x128xf32>
      %23 = vector.broadcast %20 : vector<1x128xf32> to vector<152x128xf32>
      %24 = arith.addf %22, %23 : vector<152x128xf32>
      %cst = arith.constant 0.000000e+00 : f32
      %25 = vector.broadcast %cst : f32 to vector<152x128xf32>
      %26 = arith.maximumf %24, %25 : vector<152x128xf32>
      %27 = vector.extract_strided_slice %26 {offsets = [0, 0], sizes = [32, 128], strides = [1, 1]} : vector<152x128xf32> to vector<32x128xf32>
      %c0_12 = arith.constant 0 : index
      %c0_13 = arith.constant 0 : index
      %28 = vector.load %arg7[%c0_12, %c0_13] : memref<48x128xf32, #tpu.memory_space<vmem>>, vector<32x128xf32>
      tpu.vector_store %arg7[%c0_12, %c0_13], %27 {strides = array<i32>} : memref<48x128xf32, #tpu.memory_space<vmem>>, vector<32x128xf32>,
      %c0_14 = arith.constant 0 : index
      %c0_15 = arith.constant 0 : index
      %29 = tpu.strided_load %arg7[%c0_14, %c0_15] {strides = array<i32: 3, 1>} : memref<48x128xf32, #tpu.memory_space<vmem>>, vector<16x128xf32>
      %c1_16 = arith.constant 1 : index
      %c0_17 = arith.constant 0 : index
      %30 = tpu.strided_load %arg7[%c1_16, %c0_17] {strides = array<i32: 3, 1>} : memref<48x128xf32, #tpu.memory_space<vmem>>, vector<16x128xf32>
      %31 = arith.maximumf %29, %30 : vector<16x128xf32>
      %c2 = arith.constant 2 : index
      %c0_18 = arith.constant 0 : index
      %32 = tpu.strided_load %arg7[%c2, %c0_18] {strides = array<i32: 3, 1>} : memref<48x128xf32, #tpu.memory_space<vmem>>, vector<16x128xf32>
      %33 = arith.maximumf %31, %32 : vector<16x128xf32>
      %34 = arith.truncf %33 : vector<16x128xf32> to vector<16x128xbf16>
      %c0_19 = arith.constant 0 : index
      %c0_20 = arith.constant 0 : index
      %c0_21 = arith.constant 0 : index
      %35 = vector.load %arg5[%c0_19, %c0_20, %c0_21] : memref<4x16x128xbf16, #tpu.memory_space<vmem>>, vector<1x16x128xbf16>
      %36 = vector.shape_cast %35 : vector<1x16x128xbf16> to vector<16x128xbf16>
      %37 = vector.shape_cast %34 : vector<16x128xbf16> to vector<1x16x128xbf16>
      tpu.vector_store %arg5[%c0_19, %c0_20, %c0_21], %37 {strides = array<i32>} : memref<4x16x128xbf16, #tpu.memory_space<vmem>>, vector<1x16x128xbf16>,
      %38 = vector.extract_strided_slice %26 {offsets = [40, 0], sizes = [32, 128], strides = [1, 1]} : vector<152x128xf32> to vector<32x128xf32>
      %c0_22 = arith.constant 0 : index
      %c0_23 = arith.constant 0 : index
      %39 = vector.load %arg7[%c0_22, %c0_23] : memref<48x128xf32, #tpu.memory_space<vmem>>, vector<32x128xf32>
      tpu.vector_store %arg7[%c0_22, %c0_23], %38 {strides = array<i32>} : memref<48x128xf32, #tpu.memory_space<vmem>>, vector<32x128xf32>,
      %c0_24 = arith.constant 0 : index
      %c0_25 = arith.constant 0 : index
      %40 = tpu.strided_load %arg7[%c0_24, %c0_25] {strides = array<i32: 3, 1>} : memref<48x128xf32, #tpu.memory_space<vmem>>, vector<16x128xf32>
      %c1_26 = arith.constant 1 : index
      %c0_27 = arith.constant 0 : index
      %41 = tpu.strided_load %arg7[%c1_26, %c0_27] {strides = array<i32: 3, 1>} : memref<48x128xf32, #tpu.memory_space<vmem>>, vector<16x128xf32>
      %42 = arith.maximumf %40, %41 : vector<16x128xf32>
      %c2_28 = arith.constant 2 : index
      %c0_29 = arith.constant 0 : index
      %43 = tpu.strided_load %arg7[%c2_28, %c0_29] {strides = array<i32: 3, 1>} : memref<48x128xf32, #tpu.memory_space<vmem>>, vector<16x128xf32>
      %44 = arith.maximumf %42, %43 : vector<16x128xf32>
      %45 = arith.truncf %44 : vector<16x128xf32> to vector<16x128xbf16>
      %c1_30 = arith.constant 1 : index
      %c0_31 = arith.constant 0 : index
      %c0_32 = arith.constant 0 : index
      %46 = vector.load %arg5[%c1_30, %c0_31, %c0_32] : memref<4x16x128xbf16, #tpu.memory_space<vmem>>, vector<1x16x128xbf16>
      %47 = vector.shape_cast %46 : vector<1x16x128xbf16> to vector<16x128xbf16>
      %48 = vector.shape_cast %45 : vector<16x128xbf16> to vector<1x16x128xbf16>
      tpu.vector_store %arg5[%c1_30, %c0_31, %c0_32], %48 {strides = array<i32>} : memref<4x16x128xbf16, #tpu.memory_space<vmem>>, vector<1x16x128xbf16>,
      %49 = vector.extract_strided_slice %26 {offsets = [80, 0], sizes = [32, 128], strides = [1, 1]} : vector<152x128xf32> to vector<32x128xf32>
      %c0_33 = arith.constant 0 : index
      %c0_34 = arith.constant 0 : index
      %50 = vector.load %arg7[%c0_33, %c0_34] : memref<48x128xf32, #tpu.memory_space<vmem>>, vector<32x128xf32>
      tpu.vector_store %arg7[%c0_33, %c0_34], %49 {strides = array<i32>} : memref<48x128xf32, #tpu.memory_space<vmem>>, vector<32x128xf32>,
      %c0_35 = arith.constant 0 : index
      %c0_36 = arith.constant 0 : index
      %51 = tpu.strided_load %arg7[%c0_35, %c0_36] {strides = array<i32: 3, 1>} : memref<48x128xf32, #tpu.memory_space<vmem>>, vector<16x128xf32>
      %c1_37 = arith.constant 1 : index
      %c0_38 = arith.constant 0 : index
      %52 = tpu.strided_load %arg7[%c1_37, %c0_38] {strides = array<i32: 3, 1>} : memref<48x128xf32, #tpu.memory_space<vmem>>, vector<16x128xf32>
      %53 = arith.maximumf %51, %52 : vector<16x128xf32>
      %c2_39 = arith.constant 2 : index
      %c0_40 = arith.constant 0 : index
      %54 = tpu.strided_load %arg7[%c2_39, %c0_40] {strides = array<i32: 3, 1>} : memref<48x128xf32, #tpu.memory_space<vmem>>, vector<16x128xf32>
      %55 = arith.maximumf %53, %54 : vector<16x128xf32>
      %56 = arith.truncf %55 : vector<16x128xf32> to vector<16x128xbf16>
      %c2_41 = arith.constant 2 : index
      %c0_42 = arith.constant 0 : index
      %c0_43 = arith.constant 0 : index
      %57 = vector.load %arg5[%c2_41, %c0_42, %c0_43] : memref<4x16x128xbf16, #tpu.memory_space<vmem>>, vector<1x16x128xbf16>
      %58 = vector.shape_cast %57 : vector<1x16x128xbf16> to vector<16x128xbf16>
      %59 = vector.shape_cast %56 : vector<16x128xbf16> to vector<1x16x128xbf16>
      tpu.vector_store %arg5[%c2_41, %c0_42, %c0_43], %59 {strides = array<i32>} : memref<4x16x128xbf16, #tpu.memory_space<vmem>>, vector<1x16x128xbf16>,
      %60 = vector.extract_strided_slice %26 {offsets = [120, 0], sizes = [32, 128], strides = [1, 1]} : vector<152x128xf32> to vector<32x128xf32>
      %c0_44 = arith.constant 0 : index
      %c0_45 = arith.constant 0 : index
      %61 = vector.load %arg7[%c0_44, %c0_45] : memref<48x128xf32, #tpu.memory_space<vmem>>, vector<32x128xf32>
      tpu.vector_store %arg7[%c0_44, %c0_45], %60 {strides = array<i32>} : memref<48x128xf32, #tpu.memory_space<vmem>>, vector<32x128xf32>,
      %c0_46 = arith.constant 0 : index
      %c0_47 = arith.constant 0 : index
      %62 = tpu.strided_load %arg7[%c0_46, %c0_47] {strides = array<i32: 3, 1>} : memref<48x128xf32, #tpu.memory_space<vmem>>, vector<16x128xf32>
      %c1_48 = arith.constant 1 : index
      %c0_49 = arith.constant 0 : index
      %63 = tpu.strided_load %arg7[%c1_48, %c0_49] {strides = array<i32: 3, 1>} : memref<48x128xf32, #tpu.memory_space<vmem>>, vector<16x128xf32>
      %64 = arith.maximumf %62, %63 : vector<16x128xf32>
      %c2_50 = arith.constant 2 : index
      %c0_51 = arith.constant 0 : index
      %65 = tpu.strided_load %arg7[%c2_50, %c0_51] {strides = array<i32: 3, 1>} : memref<48x128xf32, #tpu.memory_space<vmem>>, vector<16x128xf32>
      %66 = arith.maximumf %64, %65 : vector<16x128xf32>
      %67 = arith.truncf %66 : vector<16x128xf32> to vector<16x128xbf16>
      %c3 = arith.constant 3 : index
      %c0_52 = arith.constant 0 : index
      %c0_53 = arith.constant 0 : index
      %68 = vector.load %arg5[%c3, %c0_52, %c0_53] : memref<4x16x128xbf16, #tpu.memory_space<vmem>>, vector<1x16x128xbf16>
      %69 = vector.shape_cast %68 : vector<1x16x128xbf16> to vector<16x128xbf16>
      %70 = vector.shape_cast %67 : vector<16x128xbf16> to vector<1x16x128xbf16>
      tpu.vector_store %arg5[%c3, %c0_52, %c0_53], %70 {strides = array<i32>} : memref<4x16x128xbf16, #tpu.memory_space<vmem>>, vector<1x16x128xbf16>,
    } else {
    }
    return
  }
  func.func @transform_0(%arg0: i32, %arg1: i32) -> (i32, i32) {
    %c1_i32 = arith.constant 1 : i32
    %0 = arith.subi %c1_i32, %arg0 : i32
    %1 = arith.muli %arg1, %0 : i32
    %c0_i32 = arith.constant 0 : i32
    %c0_i32_0 = arith.constant 0 : i32
    return %1, %c0_i32 : i32, i32
  }
  func.func @transform_1(%arg0: i32, %arg1: i32) -> (i32, i32) {
    %c0_i32 = arith.constant 0 : i32
    %c0_i32_0 = arith.constant 0 : i32
    %c0_i32_1 = arith.constant 0 : i32
    return %c0_i32, %c0_i32_0 : i32, i32
  }
  func.func @transform_2(%arg0: i32, %arg1: i32) -> (i32, i32) {
    %c0_i32 = arith.constant 0 : i32
    %c0_i32_0 = arith.constant 0 : i32
    %c0_i32_1 = arith.constant 0 : i32
    return %c0_i32, %c0_i32_0 : i32, i32
  }
  func.func @transform_3(%arg0: i32, %arg1: i32) -> (i32, i32, i32) {
    %0 = arith.muli %arg0, %arg1 : i32
    %c0_i32 = arith.constant 0 : i32
    %c0_i32_0 = arith.constant 0 : i32
    %c0_i32_1 = arith.constant 0 : i32
    return %0, %c0_i32, %c0_i32_0 : i32, i32, i32
  }
}

</mosaic_0001>

<llo_original>
// kernel: my_conv1d_forward.1
$region0: #{my_conv1d_forward.1}
  #allocation0 [shape = 'u32[]', space=smem, size = 0x4, offset = 0x4, fixed_abs, tag = 'smem constant byte address 0x4 - core index']
  #allocation1 [shape = 'u32[144,128]{1,0:T(1,128)}', space=vmem, size = 0x12000, scoped, tag = 'internal scratch']
  #allocation2 [shape = 'f32[2,128]{1,0:T(2,128)}', space=vmem, size = 0x400, scoped, tag = 'scratch operand']
  #allocation3 [shape = 'f32[48,128]{1,0:T(8,128)}', space=vmem, size = 0x6000, scoped, tag = 'scratch operand']
  #allocation4 [shape = 'f32[1,152,128]{2,1,0:T(8,128)}', space=vmem, size = 0x13000, scoped, tag = 'scratch operand']
  %s0 = inlined_call_operand.vmem [shape: f32[160,8], index: 0, kind: input, shape index: {}]
  %s1 = inlined_call_operand.vmem [shape: f32[40,128], index: 1, kind: input, shape index: {}]
  %s2 = inlined_call_operand.vmem [shape: f32[2,128], index: 2, kind: input, shape index: {}]
  %s3 = inlined_call_operand.vmem [shape: bf16[4,16,128], index: 3, kind: output, shape index: {}]
  %s4 = sld [smem:[#allocation0]]
  $region61: #{my_conv1d_forward.1} parent=0
    _
  %s6 = ssub.s32 1, %s4
  %s7 = scalar_select 0, %s6, %s4
  loop: start=0, step=1, limit=4
  $region2: #{my_conv1d_forward.1} parent=0 // loop_pre_header
    _
  $region3: #{my_conv1d_forward.1} parent=0 // loop_header
    %s9 = sphi 0, %s13
    %p10 = scmp.ge.s32.totalorder %s9, 4
    %s16 = sphi 0, %s28
    %s17 = sphi 0, %s24
    %s18 = sphi 0, %s16
    %s19 = sphi 0, %s17
    %s20 = sphi 0, %s18
    %s21 = sphi 0, %s19
    %s35 = sphi 0, %s37
    %s38 = sphi 0, %s35
    %s39 = sphi 0, %s38
    %s55 = sphi 0, %s39
    %s59 = sphi 0, %s59
    %s61 = sphi 0, %s59
    %s62 = sphi 0, %s61
    %s76 = sphi 0, %s62
    %s80 = sphi 0, %s80
    %s82 = sphi 0, %s80
    %s83 = sphi 0, %s82
    %s97 = sphi 0, %s83
    %s105 = sphi 0, %s107
    %s108 = sphi 0, %s105
    %s109 = sphi 0, %s108
    %s125 = sphi 0, %s109
  $region4: #{my_conv1d_forward.1} parent=0 // loop_header_branch
    %12 = sbr.rel (%p10) target = $region8
  $region5: #{my_conv1d_forward.1} parent=0 // loop_body
    %s14 = ssub.s32 %s9, 1
    %s15 = ssub.s32 %s9, 2
    %s22 = sadd.s32 1, %s17
    %p23 = scmp.ge.s32.totalorder %s22, 1
    %s24 = scalar_select %p23, 0, %s22
    %s25 = sadd.s32 1, %s16
    %s26 = scalar_select %p23, %s25, %s16
    %p27 = scmp.ge.s32.totalorder %s26, 2
    %s28 = scalar_select %p27, 0, %s26
    %s29 = ssub.s32 1, %s16
    %s30 = smul.u32 %s17, %s29
    %s31 = ssub.s32 1, %s28
    %s32 = smul.u32 %s24, %s31
    %s33 = ssub.s32 %s30, %s32
    %p34 = scmp.eq.s32.totalorder %s33, 0
    %s36 = sadd.s32 %s35, 1
    %s37 = scalar_select %p34, %s35, %s36
    %p40 = pneg %p34
    %p41 = scmp.eq.s32.totalorder %s9, 1
    %p42 = por %p40, %p41
    %p43 = scmp.ne.s32.totalorder %s35, %s38
    %p44 = scmp.eq.s32.totalorder %s9, 0
    %p45 = por %p43, %p44
    %p46 = scmp.ne.s32.totalorder %s35, %s38
    %p47 = scmp.eq.s32.totalorder %s14, 1
    %p48 = por %p46, %p47
    %p49 = scmp.ne.s32.totalorder %s38, %s39
    %p50 = scmp.eq.s32.totalorder %s14, 0
    %p51 = por %p49, %p50
    %p52 = scmp.ne.s32.totalorder %s38, %s39
    %p53 = scmp.eq.s32.totalorder %s15, 1
    %p54 = por %p52, %p53
    %p56 = scmp.ne.s32.totalorder %s39, %s55
    %p57 = scmp.eq.s32.totalorder %s15, 0
    %p58 = por %p56, %p57
    %s60 = sadd.s32 %s59, 1
    %p63 = scmp.eq.s32.totalorder %s9, 1
    %p64 = scmp.ne.s32.totalorder %s59, %s61
    %p65 = scmp.eq.s32.totalorder %s9, 0
    %p66 = por %p64, %p65
    %p67 = scmp.ne.s32.totalorder %s59, %s61
    %p68 = scmp.eq.s32.totalorder %s14, 1
    %p69 = por %p67, %p68
    %p70 = scmp.ne.s32.totalorder %s61, %s62
    %p71 = scmp.eq.s32.totalorder %s14, 0
    %p72 = por %p70, %p71
    %p73 = scmp.ne.s32.totalorder %s61, %s62
    %p74 = scmp.eq.s32.totalorder %s15, 1
    %p75 = por %p73, %p74
    %p77 = scmp.ne.s32.totalorder %s62, %s76
    %p78 = scmp.eq.s32.totalorder %s15, 0
    %p79 = por %p77, %p78
    %s81 = sadd.s32 %s80, 1
    %p84 = scmp.eq.s32.totalorder %s9, 1
    %p85 = scmp.ne.s32.totalorder %s80, %s82
    %p86 = scmp.eq.s32.totalorder %s9, 0
    %p87 = por %p85, %p86
    %p88 = scmp.ne.s32.totalorder %s80, %s82
    %p89 = scmp.eq.s32.totalorder %s14, 1
    %p90 = por %p88, %p89
    %p91 = scmp.ne.s32.totalorder %s82, %s83
    %p92 = scmp.eq.s32.totalorder %s14, 0
    %p93 = por %p91, %p92
    %p94 = scmp.ne.s32.totalorder %s82, %s83
    %p95 = scmp.eq.s32.totalorder %s15, 1
    %p96 = por %p94, %p95
    %p98 = scmp.ne.s32.totalorder %s83, %s97
    %p99 = scmp.eq.s32.totalorder %s15, 0
    %p100 = por %p98, %p99
    %s101 = smul.u32 %s16, %s17
    %s102 = smul.u32 %s28, %s24
    %s103 = ssub.s32 %s101, %s102
    %p104 = scmp.eq.s32.totalorder %s103, 0
    %s106 = sadd.s32 %s105, 1
    %s107 = scalar_select %p104, %s105, %s106
    %p110 = pneg %p104
    %p111 = scmp.eq.s32.totalorder %s9, 1
    %p112 = por %p110, %p111
    %p113 = scmp.ne.s32.totalorder %s105, %s108
    %p114 = scmp.eq.s32.totalorder %s9, 0
    %p115 = por %p113, %p114
    %p116 = scmp.ne.s32.totalorder %s105, %s108
    %p117 = scmp.eq.s32.totalorder %s14, 1
    %p118 = por %p116, %p117
    %p119 = scmp.ne.s32.totalorder %s108, %s109
    %p120 = scmp.eq.s32.totalorder %s14, 0
    %p121 = por %p119, %p120
    %p122 = scmp.ne.s32.totalorder %s108, %s109
    %p123 = scmp.eq.s32.totalorder %s15, 1
    %p124 = por %p122, %p123
    %p126 = scmp.ne.s32.totalorder %s109, %s125
    %p127 = scmp.eq.s32.totalorder %s15, 0
    %p128 = por %p126, %p127
    %p129 = scmp.le.s32.totalorder 1, %s9
    %p130 = scmp.lt.s32.totalorder %s9, 3
    %p131 = pnand %p129, %p130
    %p132 = pneg %p131
    // Predicated region
    $region9: #{my_conv1d_forward.1} parent=5 // pred_check
      _
    $region10: #{my_conv1d_forward.1} parent=5 // pred_check_branch
      %134 = sbr.rel (%p131) target = $region12
    $region11: #{my_conv1d_forward.1} parent=5 // pred_region
      %s135 = ssub.s32 %s9, 1
      // Predicated region
      $region13: #{my_conv1d_forward.1} parent=11 // pred_check
        %p136 = pneg %p72
      $region14: #{my_conv1d_forward.1} parent=11 // pred_check_branch
        %138 = sbr.rel (%p136) target = $region16
      $region15: #{my_conv1d_forward.1} parent=11 // pred_region
        _
      $region16: #{my_conv1d_forward.1} parent=11 // pred_fallthru
        _
      // Predicated region
      $region17: #{my_conv1d_forward.1} parent=11 // pred_check
        %p139 = pneg %p93
      $region18: #{my_conv1d_forward.1} parent=11 // pred_check_branch
        %141 = sbr.rel (%p139) target = $region20
      $region19: #{my_conv1d_forward.1} parent=11 // pred_region
        _
      $region20: #{my_conv1d_forward.1} parent=11 // pred_fallthru
        _
    $region12: #{my_conv1d_forward.1} parent=5 // pred_fallthru
      _
    %p142 = scmp.lt.s32.totalorder %s9, 2
    // Predicated region
    $region21: #{my_conv1d_forward.1} parent=5 // pred_check
      %p143 = pneg %p142
    $region22: #{my_conv1d_forward.1} parent=5 // pred_check_branch
      %145 = sbr.rel (%p143) target = $region24
    $region23: #{my_conv1d_forward.1} parent=5 // pred_region
      // Predicated region
      $region25: #{my_conv1d_forward.1} parent=23 // pred_check
        %p146 = pneg %p45
      $region26: #{my_conv1d_forward.1} parent=23 // pred_check_branch
        %148 = sbr.rel (%p146) target = $region28
      $region27: #{my_conv1d_forward.1} parent=23 // pred_region
        %s149 = ssub.s32 1, %s16
        %s150 = smul.u32 %s17, %s149
        %s151 = smul.u32 20, %s150
        %p152 = scmp.lt.s32.totalorder %s151, 19
        %s153 = scalar_select %p152, %s151, 19
        %s154 = smul.addr %s153, 8
        %s155 = scalar_lea.vmem %s0, %s154
        %s156 = ssub.s32 1, %s16
        %s157 = smul.u32 %s17, %s156
        %s158 = smul.u32 20, %s157
      $region28: #{my_conv1d_forward.1} parent=23 // pred_fallthru
        _
    $region24: #{my_conv1d_forward.1} parent=5 // pred_fallthru
      _
    %p159 = scmp.le.s32.totalorder 1, %s9
    %p160 = scmp.lt.s32.totalorder %s9, 3
    %p161 = pnand %p159, %p160
    %p162 = pneg %p161
    // Predicated region
    $region29: #{my_conv1d_forward.1} parent=5 // pred_check
      _
    $region30: #{my_conv1d_forward.1} parent=5 // pred_check_branch
      %164 = sbr.rel (%p161) target = $region32
    $region31: #{my_conv1d_forward.1} parent=5 // pred_region
      %s165 = ssub.s32 %s9, 1
      %s166 = ssub.s32 1, %s18
      %s167 = smul.u32 %s19, %s166
      %s168 = smul.u32 20, %s167
      %p169 = scmp.lt.s32.totalorder %s168, 19
      %s170 = scalar_select %p169, %s168, 19
      %s171 = smul.addr %s170, 8
      %s172 = scalar_lea.vmem %s0, %s171
      %p173 = pneg %p51
      %p174 = pneg %p48
      %p175 = pneg %p72
      %p176 = pneg %p69
      %p177 = pneg %p93
      %p178 = pneg %p90
      %p179 = pneg %p121
      %p180 = pneg %p118
      %s181 = smul.u32 %s18, %s19
      %s182 = smul.u32 4, %s181
      %p183 = scmp.lt.s32.totalorder %s182, 3
      %s184 = scalar_select %p183, %s182, 3
      %s185 = smul.addr %s184, 2
      %s186 = smul.addr %s185, 4
      %s187 = scalar_lea.vmem %s3, %s186
      %s188 = ssub.s32 1, %s18
      %s189 = smul.u32 %s19, %s188
      %s190 = smul.u32 20, %s189
      %p191 = scmp.lt.s32.totalorder %s190, 19
      %s192 = scalar_select %p191, %s190, 19
      %s193 = smul.addr %s192, 8
      %s194 = scalar_lea.vmem %s0, %s193
      %s195 = ssub.s32 1, %s18
      %s196 = smul.u32 %s19, %s195
      %s197 = smul.u32 20, %s196
      %s198 = smul.u32 %s18, %s19
      %s199 = smul.u32 4, %s198
      %p200 = scmp.lt.s32.totalorder %s199, 3
      %s201 = scalar_select %p200, %s199, 3
      %s202 = smul.addr %s201, 2
      %s203 = smul.addr %s202, 4
      %s204 = scalar_lea.vmem %s3, %s203
      %s205 = smul.u32 %s18, %s19
      %s206 = smul.u32 4, %s205
      %p208 = scmp.eq.s32.totalorder %s18, 0
      %p209 = scmp.eq.s32.totalorder %s19, 0
      %p210 = pnand %p208, %p209
      %p211 = pneg %p210
      // Predicated region
      $region33: #{my_conv1d_forward.1} parent=31 // pred_check
        _
      $region34: #{my_conv1d_forward.1} parent=31 // pred_check_branch
        %213 = sbr.rel (%p210) target = $region36
      $region35: #{my_conv1d_forward.1} parent=31 // pred_region
        %214 = vst [vmem:[#allocation2] sm:$0x3] 0.0
        %215 = vst [vmem:[#allocation3] sm:$0xff] 0.0
        %216 = vst [vmem:[#allocation3 + $0x8] sm:$0xff] 0.0
        %217 = vst [vmem:[#allocation3 + $0x10] sm:$0xff] 0.0
        %218 = vst [vmem:[#allocation3 + $0x18] sm:$0xff] 0.0
        %219 = vst [vmem:[#allocation3 + $0x20] sm:$0xff] 0.0
        %220 = vst [vmem:[#allocation3 + $0x28] sm:$0xff] 0.0
      $region36: #{my_conv1d_forward.1} parent=31 // pred_fallthru
        _
      // Predicated region
      $region37: #{my_conv1d_forward.1} parent=31 // pred_check
        %p221 = pneg %p208
      $region38: #{my_conv1d_forward.1} parent=31 // pred_check_branch
        %223 = sbr.rel (%p221) target = $region40
      $region39: #{my_conv1d_forward.1} parent=31 // pred_region
        %v224 = vld [vmem:[%s194] sm:$0xff]
        %v225 = vld [vmem:[%s194 + $0x8] sm:$0xff]
        %v226 = vld [vmem:[%s194 + $0x10] sm:$0xff]
        %v227 = vld [vmem:[%s194 + $0x18] sm:$0xff]
        %v228 = vld [vmem:[%s194 + $0x20] sm:$0xff]
        %v229 = vld [vmem:[%s194 + $0x28] sm:$0xff]
        %v230 = vld [vmem:[%s194 + $0x30] sm:$0xff]
        %v231 = vld [vmem:[%s194 + $0x38] sm:$0xff]
        %v232 = vld [vmem:[%s194 + $0x40] sm:$0xff]
        %v233 = vld [vmem:[%s194 + $0x48] sm:$0xff]
        %v234 = vld [vmem:[%s194 + $0x50] sm:$0xff]
        %v235 = vld [vmem:[%s194 + $0x58] sm:$0xff]
        %v236 = vld [vmem:[%s194 + $0x60] sm:$0xff]
        %v237 = vld [vmem:[%s194 + $0x68] sm:$0xff]
        %v238 = vld [vmem:[%s194 + $0x70] sm:$0xff]
        %v239 = vld [vmem:[%s194 + $0x78] sm:$0xff]
        %v240 = vld [vmem:[%s194 + $0x80] sm:$0xff]
        %v241 = vld [vmem:[%s194 + $0x88] sm:$0xff]
        %v242 = vld [vmem:[%s194 + $0x90] sm:$0xff]
        %v243 = vpack.c.bf16 %v225, %v224
        %v244 = vpack.c.bf16 %v227, %v226
        %v245 = vpack.c.bf16 %v229, %v228
        %v246 = vpack.c.bf16 %v231, %v230
        %v247 = vpack.c.bf16 %v233, %v232
        %v248 = vpack.c.bf16 %v235, %v234
        %v249 = vpack.c.bf16 %v237, %v236
        %v250 = vpack.c.bf16 %v239, %v238
        %v251 = vpack.c.bf16 %v241, %v240
        %v252 = vpack.c.bf16 %v242, %v242
        %v253 = vld [vmem:[%s1] sm:$0xff]
        %v254 = vpack.c.bf16 %v253, %v253
        %v255 = vld [vmem:[%s194 + $0x1] sm:$0xff]
        %v256 = vld [vmem:[%s194 + $0x9] sm:$0xff]
        %v257 = vld [vmem:[%s194 + $0x11] sm:$0xff]
        %v258 = vld [vmem:[%s194 + $0x19] sm:$0xff]
        %v259 = vld [vmem:[%s194 + $0x21] sm:$0xff]
        %v260 = vld [vmem:[%s194 + $0x29] sm:$0xff]
        %v261 = vld [vmem:[%s194 + $0x31] sm:$0xff]
        %v262 = vld [vmem:[%s194 + $0x39] sm:$0xff]
        %v263 = vld [vmem:[%s194 + $0x41] sm:$0xff]
        %v264 = vld [vmem:[%s194 + $0x49] sm:$0xff]
        %v265 = vld [vmem:[%s194 + $0x51] sm:$0xff]
        %v266 = vld [vmem:[%s194 + $0x59] sm:$0xff]
        %v267 = vld [vmem:[%s194 + $0x61] sm:$0xff]
        %v268 = vld [vmem:[%s194 + $0x69] sm:$0xff]
        %v269 = vld [vmem:[%s194 + $0x71] sm:$0xff]
        %v270 = vld [vmem:[%s194 + $0x79] sm:$0xff]
        %v271 = vld [vmem:[%s194 + $0x81] sm:$0xff]
        %v272 = vld [vmem:[%s194 + $0x89] sm:$0xff]
        %v273 = vld [vmem:[%s194 + $0x91] sm:$0xff]
        %v274 = vpack.c.bf16 %v256, %v255
        %v275 = vpack.c.bf16 %v258, %v257
        %v276 = vpack.c.bf16 %v260, %v259
        %v277 = vpack.c.bf16 %v262, %v261
        %v278 = vpack.c.bf16 %v264, %v263
        %v279 = vpack.c.bf16 %v266, %v265
        %v280 = vpack.c.bf16 %v268, %v267
        %v281 = vpack.c.bf16 %v270, %v269
        %v282 = vpack.c.bf16 %v272, %v271
        %v283 = vpack.c.bf16 %v273, %v273
        %v284 = vld [vmem:[%s1 + $0x8] sm:$0xff]
        %v285 = vpack.c.bf16 %v284, %v284
        %vm286 = vcmask 64512
        %v288 = vsel %vm286, %v274, 0
        %v291 = vsel %vm286, %v275, 0
        %v294 = vsel %vm286, %v276, 0
        %v297 = vsel %vm286, %v277, 0
        %v300 = vsel %vm286, %v278, 0
        %v303 = vsel %vm286, %v279, 0
        %v306 = vsel %vm286, %v280, 0
        %v309 = vsel %vm286, %v281, 0
        %v312 = vsel %vm286, %v282, 0
        %v315 = vsel %vm286, %v283, 0
        %vm317 = vcmask 1043456
        %v319 = vsel %vm317, %v285, 0
        %321 = vmatprep.subr.bf16.mxu0 0
        %322 = vmatpush1.bf16.msra.mxu0 %v319
        %323 = vmatprep.subr.bf16.mxu0 0
        %324 = vmatpush1.bf16.msra.mxu0 0
        %325 = vmatprep.subr.bf16.mxu0 0
        %326 = vmatpush1.bf16.msra.mxu0 0
        %327 = vmatprep.subr.bf16.mxu0 0
        %328 = vmatpush1.bf16.msra.mxu0 0
        %329 = vmatprep.subr.bf16.mxu0 0
        %330 = vmatpush1.bf16.msra.mxu0 0
        %331 = vmatprep.subr.bf16.mxu0 0
        %332 = vmatpush1.bf16.msra.mxu0 0
        %333 = vmatprep.subr.bf16.mxu0 0
        %334 = vmatpush1.bf16.msra.mxu0 0
        %335 = vmatprep.subr.bf16.mxu0 0
        %336 = vmatpush1.bf16.msra.mxu0 0
        %337 = vmatprep.subr.bf16.mxu0 0
        %338 = vmatpush1.bf16.msra.mxu0 0
        %339 = vmatprep.subr.bf16.mxu0 0
        %340 = vmatpush1.bf16.msra.mxu0 0
        %341 = vmatprep.subr.bf16.mxu0 0
        %342 = vmatpush1.bf16.msra.mxu0 0
        %343 = vmatprep.subr.bf16.mxu0 0
        %344 = vmatpush1.bf16.msra.mxu0 0
        %345 = vmatprep.subr.bf16.mxu0 0
        %346 = vmatpush1.bf16.msra.mxu0 0
        %347 = vmatprep.subr.bf16.mxu0 0
        %348 = vmatpush1.bf16.msra.mxu0 0
        %349 = vmatprep.subr.bf16.mxu0 0
        %350 = vmatpush1.bf16.msra.mxu0 0
        %351 = vmatprep.subr.bf16.mxu0 0
        %352 = vmatpush1.bf16.msra.mxu0 0
        %353 = vmatprep.mubr.bf16.mxu0 0
        %354 = vmatmul.mubr.bf16.gmra.mrb[0].mxu0 %v288
        %v355 = vpop.f32.mrb[0].mxu0
        %v356 = vadd.f32 0.0, %v355
        %v357 = vpop.f32.mrb[0].mxu0
        %v358 = vpop.f32.mrb[0].mxu0
        %v359 = vadd.f32 0.0, %v358
        %v360 = vpop.f32.mrb[0].mxu0
        %361 = vmatprep.mubr.bf16.mxu0 0
        %362 = vmatmul.mubr.bf16.gmra.mrb[0].mxu0 %v291
        %v363 = vpop.f32.mrb[0].mxu0
        %v364 = vadd.f32 0.0, %v363
        %v365 = vpop.f32.mrb[0].mxu0
        %v366 = vpop.f32.mrb[0].mxu0
        %v367 = vadd.f32 0.0, %v366
        %v368 = vpop.f32.mrb[0].mxu0
        %369 = vmatprep.mubr.bf16.mxu0 0
        %370 = vmatmul.mubr.bf16.gmra.mrb[0].mxu0 %v294
        %v371 = vpop.f32.mrb[0].mxu0
        %v372 = vadd.f32 0.0, %v371
        %v373 = vpop.f32.mrb[0].mxu0
        %v374 = vpop.f32.mrb[0].mxu0
        %v375 = vadd.f32 0.0, %v374
        %v376 = vpop.f32.mrb[0].mxu0
        %377 = vmatprep.mubr.bf16.mxu0 0
        %378 = vmatmul.mubr.bf16.gmra.mrb[0].mxu0 %v297
        %v379 = vpop.f32.mrb[0].mxu0
        %v380 = vadd.f32 0.0, %v379
        %v381 = vpop.f32.mrb[0].mxu0
        %v382 = vpop.f32.mrb[0].mxu0
        %v383 = vadd.f32 0.0, %v382
        %v384 = vpop.f32.mrb[0].mxu0
        %385 = vmatprep.mubr.bf16.mxu0 0
        %386 = vmatmul.mubr.bf16.gmra.mrb[0].mxu0 %v300
        %v387 = vpop.f32.mrb[0].mxu0
        %v388 = vadd.f32 0.0, %v387
        %v389 = vpop.f32.mrb[0].mxu0
        %v390 = vpop.f32.mrb[0].mxu0
        %v391 = vadd.f32 0.0, %v390
        %v392 = vpop.f32.mrb[0].mxu0
        %393 = vmatprep.mubr.bf16.mxu0 0
        %394 = vmatmul.mubr.bf16.gmra.mrb[0].mxu0 %v303
        %v395 = vpop.f32.mrb[0].mxu0
        %v396 = vadd.f32 0.0, %v395
        %v397 = vpop.f32.mrb[0].mxu0
        %v398 = vpop.f32.mrb[0].mxu0
        %v399 = vadd.f32 0.0, %v398
        %v400 = vpop.f32.mrb[0].mxu0
        %401 = vmatprep.mubr.bf16.mxu0 0
        %402 = vmatmul.mubr.bf16.gmra.mrb[0].mxu0 %v306
        %v403 = vpop.f32.mrb[0].mxu0
        %v404 = vadd.f32 0.0, %v403
        %v405 = vpop.f32.mrb[0].mxu0
        %v406 = vpop.f32.mrb[0].mxu0
        %v407 = vadd.f32 0.0, %v406
        %v408 = vpop.f32.mrb[0].mxu0
        %409 = vmatprep.mubr.bf16.mxu0 0
        %410 = vmatmul.mubr.bf16.gmra.mrb[0].mxu0 %v309
        %v411 = vpop.f32.mrb[0].mxu0
        %v412 = vadd.f32 0.0, %v411
        %v413 = vpop.f32.mrb[0].mxu0
        %v414 = vpop.f32.mrb[0].mxu0
        %v415 = vadd.f32 0.0, %v414
        %v416 = vpop.f32.mrb[0].mxu0
        %417 = vmatprep.mubr.bf16.mxu0 0
        %418 = vmatmul.mubr.bf16.gmra.mrb[0].mxu0 %v312
        %v419 = vpop.f32.mrb[0].mxu0
        %v420 = vadd.f32 0.0, %v419
        %v421 = vpop.f32.mrb[0].mxu0
        %v422 = vpop.f32.mrb[0].mxu0
        %v423 = vadd.f32 0.0, %v422
        %v424 = vpop.f32.mrb[0].mxu0
        %425 = vmatprep.mubr.bf16.mxu0 0
        %426 = vmatmul.mubr.bf16.gmra.mrb[0].mxu0 %v315
        %v427 = vpop.f32.mrb[0].mxu0
        %v428 = vadd.f32 0.0, %v427
        %v429 = vpop.f32.mrb[0].mxu0
        %v430 = vpop.f32.mrb[0].mxu0
        %v431 = vpop.f32.mrb[0].mxu0
        %432 = vdwg.mxu0
        %v434 = vsel %vm286, %v243, 0
        %v437 = vsel %vm286, %v244, 0
        %v440 = vsel %vm286, %v245, 0
        %v443 = vsel %vm286, %v246, 0
        %v446 = vsel %vm286, %v247, 0
        %v449 = vsel %vm286, %v248, 0
        %v452 = vsel %vm286, %v249, 0
        %v455 = vsel %vm286, %v250, 0
        %v458 = vsel %vm286, %v251, 0
        %v461 = vsel %vm286, %v252, 0
        %v464 = vsel %vm317, %v254, 0
        %466 = vmatprep.subr.bf16.mxu0 0
        %467 = vmatpush1.bf16.msra.mxu0 %v464
        %468 = vmatprep.subr.bf16.mxu0 0
        %469 = vmatpush1.bf16.msra.mxu0 0
        %470 = vmatprep.subr.bf16.mxu0 0
        %471 = vmatpush1.bf16.msra.mxu0 0
        %472 = vmatprep.subr.bf16.mxu0 0
        %473 = vmatpush1.bf16.msra.mxu0 0
        %474 = vmatprep.subr.bf16.mxu0 0
        %475 = vmatpush1.bf16.msra.mxu0 0
        %476 = vmatprep.subr.bf16.mxu0 0
        %477 = vmatpush1.bf16.msra.mxu0 0
        %478 = vmatprep.subr.bf16.mxu0 0
        %479 = vmatpush1.bf16.msra.mxu0 0
        %480 = vmatprep.subr.bf16.mxu0 0
        %481 = vmatpush1.bf16.msra.mxu0 0
        %482 = vmatprep.subr.bf16.mxu0 0
        %483 = vmatpush1.bf16.msra.mxu0 0
        %484 = vmatprep.subr.bf16.mxu0 0
        %485 = vmatpush1.bf16.msra.mxu0 0
        %486 = vmatprep.subr.bf16.mxu0 0
        %487 = vmatpush1.bf16.msra.mxu0 0
        %488 = vmatprep.subr.bf16.mxu0 0
        %489 = vmatpush1.bf16.msra.mxu0 0
        %490 = vmatprep.subr.bf16.mxu0 0
        %491 = vmatpush1.bf16.msra.mxu0 0
        %492 = vmatprep.subr.bf16.mxu0 0
        %493 = vmatpush1.bf16.msra.mxu0 0
        %494 = vmatprep.subr.bf16.mxu0 0
        %495 = vmatpush1.bf16.msra.mxu0 0
        %496 = vmatprep.subr.bf16.mxu0 0
        %497 = vmatpush1.bf16.msra.mxu0 0
        %498 = vmatprep.mubr.bf16.mxu0 0
        %499 = vmatmul.mubr.bf16.gmra.mrb[0].mxu0 %v434
        %v500 = vpop.f32.mrb[0].mxu0
        %v501 = vadd.f32 %v356, %v500
        %v502 = vpop.f32.mrb[0].mxu0
        %v503 = vpop.f32.mrb[0].mxu0
        %v504 = vadd.f32 %v359, %v503
        %v505 = vpop.f32.mrb[0].mxu0
        %506 = vmatprep.mubr.bf16.mxu0 0
        %507 = vmatmul.mubr.bf16.gmra.mrb[0].mxu0 %v437
        %v508 = vpop.f32.mrb[0].mxu0
        %v509 = vadd.f32 %v364, %v508
        %v510 = vpop.f32.mrb[0].mxu0
        %v511 = vpop.f32.mrb[0].mxu0
        %v512 = vadd.f32 %v367, %v511
        %v513 = vpop.f32.mrb[0].mxu0
        %514 = vmatprep.mubr.bf16.mxu0 0
        %515 = vmatmul.mubr.bf16.gmra.mrb[0].mxu0 %v440
        %v516 = vpop.f32.mrb[0].mxu0
        %v517 = vadd.f32 %v372, %v516
        %v518 = vpop.f32.mrb[0].mxu0
        %v519 = vpop.f32.mrb[0].mxu0
        %v520 = vadd.f32 %v375, %v519
        %v521 = vpop.f32.mrb[0].mxu0
        %522 = vmatprep.mubr.bf16.mxu0 0
        %523 = vmatmul.mubr.bf16.gmra.mrb[0].mxu0 %v443
        %v524 = vpop.f32.mrb[0].mxu0
        %v525 = vadd.f32 %v380, %v524
        %v526 = vpop.f32.mrb[0].mxu0
        %v527 = vpop.f32.mrb[0].mxu0
        %v528 = vadd.f32 %v383, %v527
        %v529 = vpop.f32.mrb[0].mxu0
        %530 = vmatprep.mubr.bf16.mxu0 0
        %531 = vmatmul.mubr.bf16.gmra.mrb[0].mxu0 %v446
        %v532 = vpop.f32.mrb[0].mxu0
        %v533 = vadd.f32 %v388, %v532
        %v534 = vpop.f32.mrb[0].mxu0
        %v535 = vpop.f32.mrb[0].mxu0
        %v536 = vadd.f32 %v391, %v535
        %v537 = vpop.f32.mrb[0].mxu0
        %538 = vmatprep.mubr.bf16.mxu0 0
        %539 = vmatmul.mubr.bf16.gmra.mrb[0].mxu0 %v449
        %v540 = vpop.f32.mrb[0].mxu0
        %v541 = vadd.f32 %v396, %v540
        %v542 = vpop.f32.mrb[0].mxu0
        %v543 = vpop.f32.mrb[0].mxu0
        %v544 = vadd.f32 %v399, %v543
        %v545 = vpop.f32.mrb[0].mxu0
        %546 = vmatprep.mubr.bf16.mxu0 0
        %547 = vmatmul.mubr.bf16.gmra.mrb[0].mxu0 %v452
        %v548 = vpop.f32.mrb[0].mxu0
        %v549 = vadd.f32 %v404, %v548
        %v550 = vpop.f32.mrb[0].mxu0
        %v551 = vpop.f32.mrb[0].mxu0
        %v552 = vadd.f32 %v407, %v551
        %v553 = vpop.f32.mrb[0].mxu0
        %554 = vmatprep.mubr.bf16.mxu0 0
        %555 = vmatmul.mubr.bf16.gmra.mrb[0].mxu0 %v455
        %v556 = vpop.f32.mrb[0].mxu0
        %v557 = vadd.f32 %v412, %v556
        %v558 = vpop.f32.mrb[0].mxu0
        %v559 = vpop.f32.mrb[0].mxu0
        %v560 = vadd.f32 %v415, %v559
        %v561 = vpop.f32.mrb[0].mxu0
        %562 = vmatprep.mubr.bf16.mxu0 0
        %563 = vmatmul.mubr.bf16.gmra.mrb[0].mxu0 %v458
        %v564 = vpop.f32.mrb[0].mxu0
        %v565 = vadd.f32 %v420, %v564
        %v566 = vpop.f32.mrb[0].mxu0
        %v567 = vpop.f32.mrb[0].mxu0
        %v568 = vadd.f32 %v423, %v567
        %v569 = vpop.f32.mrb[0].mxu0
        %570 = vmatprep.mubr.bf16.mxu0 0
        %571 = vmatmul.mubr.bf16.gmra.mrb[0].mxu0 %v461
        %v572 = vpop.f32.mrb[0].mxu0
        %v573 = vadd.f32 %v428, %v572
        %v574 = vpop.f32.mrb[0].mxu0
        %v575 = vpop.f32.mrb[0].mxu0
        %v576 = vpop.f32.mrb[0].mxu0
        %577 = vdwg.mxu0
        %v578 = vld [vmem:[%s194 + $0x2] sm:$0xff]
        %v579 = vld [vmem:[%s194 + $0xa] sm:$0xff]
        %v580 = vld [vmem:[%s194 + $0x12] sm:$0xff]
        %v581 = vld [vmem:[%s194 + $0x1a] sm:$0xff]
        %v582 = vld [vmem:[%s194 + $0x22] sm:$0xff]
        %v583 = vld [vmem:[%s194 + $0x2a] sm:$0xff]
        %v584 = vld [vmem:[%s194 + $0x32] sm:$0xff]
        %v585 = vld [vmem:[%s194 + $0x3a] sm:$0xff]
        %v586 = vld [vmem:[%s194 + $0x42] sm:$0xff]
        %v587 = vld [vmem:[%s194 + $0x4a] sm:$0xff]
        %v588 = vld [vmem:[%s194 + $0x52] sm:$0xff]
        %v589 = vld [vmem:[%s194 + $0x5a] sm:$0xff]
        %v590 = vld [vmem:[%s194 + $0x62] sm:$0xff]
        %v591 = vld [vmem:[%s194 + $0x6a] sm:$0xff]
        %v592 = vld [vmem:[%s194 + $0x72] sm:$0xff]
        %v593 = vld [vmem:[%s194 + $0x7a] sm:$0xff]
        %v594 = vld [vmem:[%s194 + $0x82] sm:$0xff]
        %v595 = vld [vmem:[%s194 + $0x8a] sm:$0xff]
        %v596 = vld [vmem:[%s194 + $0x92] sm:$0xff]
        %v597 = vpack.c.bf16 %v579, %v578
        %v598 = vpack.c.bf16 %v581, %v580
        %v599 = vpack.c.bf16 %v583, %v582
        %v600 = vpack.c.bf16 %v585, %v584
        %v601 = vpack.c.bf16 %v587, %v586
        %v602 = vpack.c.bf16 %v589, %v588
        %v603 = vpack.c.bf16 %v591, %v590
        %v604 = vpack.c.bf16 %v593, %v592
        %v605 = vpack.c.bf16 %v595, %v594
        %v606 = vpack.c.bf16 %v596, %v596
        %v607 = vld [vmem:[%s1 + $0x10] sm:$0xff]
        %v608 = vpack.c.bf16 %v607, %v607
        %v610 = vsel %vm286, %v597, 0
        %v613 = vsel %vm286, %v598, 0
        %v616 = vsel %vm286, %v599, 0
        %v619 = vsel %vm286, %v600, 0
        %v622 = vsel %vm286, %v601, 0
        %v625 = vsel %vm286, %v602, 0
        %v628 = vsel %vm286, %v603, 0
        %v631 = vsel %vm286, %v604, 0
        %v634 = vsel %vm286, %v605, 0
        %v637 = vsel %vm286, %v606, 0
        %v640 = vsel %vm317, %v608, 0
        %642 = vmatprep.subr.bf16.mxu0 0
        %643 = vmatpush1.bf16.msra.mxu0 %v640
        %644 = vmatprep.subr.bf16.mxu0 0
        %645 = vmatpush1.bf16.msra.mxu0 0
        %646 = vmatprep.subr.bf16.mxu0 0
        %647 = vmatpush1.bf16.msra.mxu0 0
        %648 = vmatprep.subr.bf16.mxu0 0
        %649 = vmatpush1.bf16.msra.mxu0 0
        %650 = vmatprep.subr.bf16.mxu0 0
        %651 = vmatpush1.bf16.msra.mxu0 0
        %652 = vmatprep.subr.bf16.mxu0 0
        %653 = vmatpush1.bf16.msra.mxu0 0
        %654 = vmatprep.subr.bf16.mxu0 0
        %655 = vmatpush1.bf16.msra.mxu0 0
        %656 = vmatprep.subr.bf16.mxu0 0
        %657 = vmatpush1.bf16.msra.mxu0 0
        %658 = vmatprep.subr.bf16.mxu0 0
        %659 = vmatpush1.bf16.msra.mxu0 0
        %660 = vmatprep.subr.bf16.mxu0 0
        %661 = vmatpush1.bf16.msra.mxu0 0
        %662 = vmatprep.subr.bf16.mxu0 0
        %663 = vmatpush1.bf16.msra.mxu0 0
        %664 = vmatprep.subr.bf16.mxu0 0
        %665 = vmatpush1.bf16.msra.mxu0 0
        %666 = vmatprep.subr.bf16.mxu0 0
        %667 = vmatpush1.bf16.msra.mxu0 0
        %668 = vmatprep.subr.bf16.mxu0 0
        %669 = vmatpush1.bf16.msra.mxu0 0
        %670 = vmatprep.subr.bf16.mxu0 0
        %671 = vmatpush1.bf16.msra.mxu0 0
        %672 = vmatprep.subr.bf16.mxu0 0
        %673 = vmatpush1.bf16.msra.mxu0 0
        %674 = vmatprep.mubr.bf16.mxu0 0
        %675 = vmatmul.mubr.bf16.gmra.mrb[0].mxu0 %v610
        %v676 = vpop.f32.mrb[0].mxu0
        %v677 = vadd.f32 0.0, %v676
        %v678 = vpop.f32.mrb[0].mxu0
        %v679 = vpop.f32.mrb[0].mxu0
        %v680 = vadd.f32 0.0, %v679
        %v681 = vpop.f32.mrb[0].mxu0
        %682 = vmatprep.mubr.bf16.mxu0 0
        %683 = vmatmul.mubr.bf16.gmra.mrb[0].mxu0 %v613
        %v684 = vpop.f32.mrb[0].mxu0
        %v685 = vadd.f32 0.0, %v684
        %v686 = vpop.f32.mrb[0].mxu0
        %v687 = vpop.f32.mrb[0].mxu0
        %v688 = vadd.f32 0.0, %v687
        %v689 = vpop.f32.mrb[0].mxu0
        %690 = vmatprep.mubr.bf16.mxu0 0
        %691 = vmatmul.mubr.bf16.gmra.mrb[0].mxu0 %v616
        %v692 = vpop.f32.mrb[0].mxu0
        %v693 = vadd.f32 0.0, %v692
        %v694 = vpop.f32.mrb[0].mxu0
        %v695 = vpop.f32.mrb[0].mxu0
        %v696 = vadd.f32 0.0, %v695
        %v697 = vpop.f32.mrb[0].mxu0
        %698 = vmatprep.mubr.bf16.mxu0 0
        %699 = vmatmul.mubr.bf16.gmra.mrb[0].mxu0 %v619
        %v700 = vpop.f32.mrb[0].mxu0
        %v701 = vadd.f32 0.0, %v700
        %v702 = vpop.f32.mrb[0].mxu0
        %v703 = vpop.f32.mrb[0].mxu0
        %v704 = vadd.f32 0.0, %v703
        %v705 = vpop.f32.mrb[0].mxu0
        %706 = vmatprep.mubr.bf16.mxu0 0
        %707 = vmatmul.mubr.bf16.gmra.mrb[0].mxu0 %v622
        %v708 = vpop.f32.mrb[0].mxu0
        %v709 = vadd.f32 0.0, %v708
        %v710 = vpop.f32.mrb[0].mxu0
        %v711 = vpop.f32.mrb[0].mxu0
        %v712 = vadd.f32 0.0, %v711
        %v713 = vpop.f32.mrb[0].mxu0
        %714 = vmatprep.mubr.bf16.mxu0 0
        %715 = vmatmul.mubr.bf16.gmra.mrb[0].mxu0 %v625
        %v716 = vpop.f32.mrb[0].mxu0
        %v717 = vadd.f32 0.0, %v716
        %v718 = vpop.f32.mrb[0].mxu0
        %v719 = vpop.f32.mrb[0].mxu0
        %v720 = vadd.f32 0.0, %v719
        %v721 = vpop.f32.mrb[0].mxu0
        %722 = vmatprep.mubr.bf16.mxu0 0
        %723 = vmatmul.mubr.bf16.gmra.mrb[0].mxu0 %v628
        %v724 = vpop.f32.mrb[0].mxu0
        %v725 = vadd.f32 0.0, %v724
        %v726 = vpop.f32.mrb[0].mxu0
        %v727 = vpop.f32.mrb[0].mxu0
        %v728 = vadd.f32 0.0, %v727
        %v729 = vpop.f32.mrb[0].mxu0
        %730 = vmatprep.mubr.bf16.mxu0 0
        %731 = vmatmul.mubr.bf16.gmra.mrb[0].mxu0 %v631
        %v732 = vpop.f32.mrb[0].mxu0
        %v733 = vadd.f32 0.0, %v732
        %v734 = vpop.f32.mrb[0].mxu0
        %v735 = vpop.f32.mrb[0].mxu0
        %v736 = vadd.f32 0.0, %v735
        %v737 = vpop.f32.mrb[0].mxu0
        %738 = vmatprep.mubr.bf16.mxu0 0
        %739 = vmatmul.mubr.bf16.gmra.mrb[0].mxu0 %v634
        %v740 = vpop.f32.mrb[0].mxu0
        %v741 = vadd.f32 0.0, %v740
        %v742 = vpop.f32.mrb[0].mxu0
        %v743 = vpop.f32.mrb[0].mxu0
        %v744 = vadd.f32 0.0, %v743
        %v745 = vpop.f32.mrb[0].mxu0
        %746 = vmatprep.mubr.bf16.mxu0 0
        %747 = vmatmul.mubr.bf16.gmra.mrb[0].mxu0 %v637
        %v748 = vpop.f32.mrb[0].mxu0
        %v749 = vadd.f32 0.0, %v748
        %v750 = vpop.f32.mrb[0].mxu0
        %v751 = vpop.f32.mrb[0].mxu0
        %v752 = vpop.f32.mrb[0].mxu0
        %753 = vdwg.mxu0
        %v754 = vadd.f32 %v501, %v677
        %v755 = vadd.f32 %v504, %v680
        %v756 = vadd.f32 %v509, %v685
        %v757 = vadd.f32 %v512, %v688
        %v758 = vadd.f32 %v517, %v693
        %v759 = vadd.f32 %v520, %v696
        %v760 = vadd.f32 %v525, %v701
        %v761 = vadd.f32 %v528, %v704
        %v762 = vadd.f32 %v533, %v709
        %v763 = vadd.f32 %v536, %v712
        %v764 = vadd.f32 %v541, %v717
        %v765 = vadd.f32 %v544, %v720
        %v766 = vadd.f32 %v549, %v725
        %v767 = vadd.f32 %v552, %v728
        %v768 = vadd.f32 %v557, %v733
        %v769 = vadd.f32 %v560, %v736
        %v770 = vadd.f32 %v565, %v741
        %v771 = vadd.f32 %v568, %v744
        %v772 = vadd.f32 %v573, %v749
        %v773 = vld [vmem:[%s194 + $0x3] sm:$0xff]
        %v774 = vld [vmem:[%s194 + $0xb] sm:$0xff]
        %v775 = vld [vmem:[%s194 + $0x13] sm:$0xff]
        %v776 = vld [vmem:[%s194 + $0x1b] sm:$0xff]
        %v777 = vld [vmem:[%s194 + $0x23] sm:$0xff]
        %v778 = vld [vmem:[%s194 + $0x2b] sm:$0xff]
        %v779 = vld [vmem:[%s194 + $0x33] sm:$0xff]
        %v780 = vld [vmem:[%s194 + $0x3b] sm:$0xff]
        %v781 = vld [vmem:[%s194 + $0x43] sm:$0xff]
        %v782 = vld [vmem:[%s194 + $0x4b] sm:$0xff]
        %v783 = vld [vmem:[%s194 + $0x53] sm:$0xff]
        %v784 = vld [vmem:[%s194 + $0x5b] sm:$0xff]
        %v785 = vld [vmem:[%s194 + $0x63] sm:$0xff]
        %v786 = vld [vmem:[%s194 + $0x6b] sm:$0xff]
        %v787 = vld [vmem:[%s194 + $0x73] sm:$0xff]
        %v788 = vld [vmem:[%s194 + $0x7b] sm:$0xff]
        %v789 = vld [vmem:[%s194 + $0x83] sm:$0xff]
        %v790 = vld [vmem:[%s194 + $0x8b] sm:$0xff]
        %v791 = vld [vmem:[%s194 + $0x93] sm:$0xff]
        %v792 = vpack.c.bf16 %v774, %v773
        %v793 = vpack.c.bf16 %v776, %v775
        %v794 = vpack.c.bf16 %v778, %v777
        %v795 = vpack.c.bf16 %v780, %v779
        %v796 = vpack.c.bf16 %v782, %v781
        %v797 = vpack.c.bf16 %v784, %v783
        %v798 = vpack.c.bf16 %v786, %v785
        %v799 = vpack.c.bf16 %v788, %v787
        %v800 = vpack.c.bf16 %v790, %v789
        %v801 = vpack.c.bf16 %v791, %v791
        %v802 = vld [vmem:[%s1 + $0x18] sm:$0xff]
        %v803 = vpack.c.bf16 %v802, %v802
        %v805 = vsel %vm286, %v792, 0
        %v808 = vsel %vm286, %v793, 0
        %v811 = vsel %vm286, %v794, 0
        %v814 = vsel %vm286, %v795, 0
        %v817 = vsel %vm286, %v796, 0
        %v820 = vsel %vm286, %v797, 0
        %v823 = vsel %vm286, %v798, 0
        %v826 = vsel %vm286, %v799, 0
        %v829 = vsel %vm286, %v800, 0
        %v832 = vsel %vm286, %v801, 0
        %v835 = vsel %vm317, %v803, 0
        %837 = vmatprep.subr.bf16.mxu0 0
        %838 = vmatpush1.bf16.msra.mxu0 %v835
        %839 = vmatprep.subr.bf16.mxu0 0
        %840 = vmatpush1.bf16.msra.mxu0 0
        %841 = vmatprep.subr.bf16.mxu0 0
        %842 = vmatpush1.bf16.msra.mxu0 0
        %843 = vmatprep.subr.bf16.mxu0 0
        %844 = vmatpush1.bf16.msra.mxu0 0
        %845 = vmatprep.subr.bf16.mxu0 0
        %846 = vmatpush1.bf16.msra.mxu0 0
        %847 = vmatprep.subr.bf16.mxu0 0
        %848 = vmatpush1.bf16.msra.mxu0 0
        %849 = vmatprep.subr.bf16.mxu0 0
        %850 = vmatpush1.bf16.msra.mxu0 0
        %851 = vmatprep.subr.bf16.mxu0 0
        %852 = vmatpush1.bf16.msra.mxu0 0
        %853 = vmatprep.subr.bf16.mxu0 0
        %854 = vmatpush1.bf16.msra.mxu0 0
        %855 = vmatprep.subr.bf16.mxu0 0
        %856 = vmatpush1.bf16.msra.mxu0 0
        %857 = vmatprep.subr.bf16.mxu0 0
        %858 = vmatpush1.bf16.msra.mxu0 0
        %859 = vmatprep.subr.bf16.mxu0 0
        %860 = vmatpush1.bf16.msra.mxu0 0
        %861 = vmatprep.subr.bf16.mxu0 0
        %862 = vmatpush1.bf16.msra.mxu0 0
        %863 = vmatprep.subr.bf16.mxu0 0
        %864 = vmatpush1.bf16.msra.mxu0 0
        %865 = vmatprep.subr.bf16.mxu0 0
        %866 = vmatpush1.bf16.msra.mxu0 0
        %867 = vmatprep.subr.bf16.mxu0 0
        %868 = vmatpush1.bf16.msra.mxu0 0
        %869 = vmatprep.mubr.bf16.mxu0 0
        %870 = vmatmul.mubr.bf16.gmra.mrb[0].mxu0 %v805
        %v871 = vpop.f32.mrb[0].mxu0
        %v872 = vadd.f32 0.0, %v871
        %v873 = vpop.f32.mrb[0].mxu0
        %v874 = vpop.f32.mrb[0].mxu0
        %v875 = vadd.f32 0.0, %v874
        %v876 = vpop.f32.mrb[0].mxu0
        %877 = vmatprep.mubr.bf16.mxu0 0
        %878 = vmatmul.mubr.bf16.gmra.mrb[0].mxu0 %v808
        %v879 = vpop.f32.mrb[0].mxu0
        %v880 = vadd.f32 0.0, %v879
        %v881 = vpop.f32.mrb[0].mxu0
        %v882 = vpop.f32.mrb[0].mxu0
        %v883 = vadd.f32 0.0, %v882
        %v884 = vpop.f32.mrb[0].mxu0
        %885 = vmatprep.mubr.bf16.mxu0 0
        %886 = vmatmul.mubr.bf16.gmra.mrb[0].mxu0 %v811
        %v887 = vpop.f32.mrb[0].mxu0
        %v888 = vadd.f32 0.0, %v887
        %v889 = vpop.f32.mrb[0].mxu0
        %v890 = vpop.f32.mrb[0].mxu0
        %v891 = vadd.f32 0.0, %v890
        %v892 = vpop.f32.mrb[0].mxu0
        %893 = vmatprep.mubr.bf16.mxu0 0
        %894 = vmatmul.mubr.bf16.gmra.mrb[0].mxu0 %v814
        %v895 = vpop.f32.mrb[0].mxu0
        %v896 = vadd.f32 0.0, %v895
        %v897 = vpop.f32.mrb[0].mxu0
        %v898 = vpop.f32.mrb[0].mxu0
        %v899 = vadd.f32 0.0, %v898
        %v900 = vpop.f32.mrb[0].mxu0
        %901 = vmatprep.mubr.bf16.mxu0 0
        %902 = vmatmul.mubr.bf16.gmra.mrb[0].mxu0 %v817
        %v903 = vpop.f32.mrb[0].mxu0
        %v904 = vadd.f32 0.0, %v903
        %v905 = vpop.f32.mrb[0].mxu0
        %v906 = vpop.f32.mrb[0].mxu0
        %v907 = vadd.f32 0.0, %v906
        %v908 = vpop.f32.mrb[0].mxu0
        %909 = vmatprep.mubr.bf16.mxu0 0
        %910 = vmatmul.mubr.bf16.gmra.mrb[0].mxu0 %v820
        %v911 = vpop.f32.mrb[0].mxu0
        %v912 = vadd.f32 0.0, %v911
        %v913 = vpop.f32.mrb[0].mxu0
        %v914 = vpop.f32.mrb[0].mxu0
        %v915 = vadd.f32 0.0, %v914
        %v916 = vpop.f32.mrb[0].mxu0
        %917 = vmatprep.mubr.bf16.mxu0 0
        %918 = vmatmul.mubr.bf16.gmra.mrb[0].mxu0 %v823
        %v919 = vpop.f32.mrb[0].mxu0
        %v920 = vadd.f32 0.0, %v919
        %v921 = vpop.f32.mrb[0].mxu0
        %v922 = vpop.f32.mrb[0].mxu0
        %v923 = vadd.f32 0.0, %v922
        %v924 = vpop.f32.mrb[0].mxu0
        %925 = vmatprep.mubr.bf16.mxu0 0
        %926 = vmatmul.mubr.bf16.gmra.mrb[0].mxu0 %v826
        %v927 = vpop.f32.mrb[0].mxu0
        %v928 = vadd.f32 0.0, %v927
        %v929 = vpop.f32.mrb[0].mxu0
        %v930 = vpop.f32.mrb[0].mxu0
        %v931 = vadd.f32 0.0, %v930
        %v932 = vpop.f32.mrb[0].mxu0
        %933 = vmatprep.mubr.bf16.mxu0 0
        %934 = vmatmul.mubr.bf16.gmra.mrb[0].mxu0 %v829
        %v935 = vpop.f32.mrb[0].mxu0
        %v936 = vadd.f32 0.0, %v935
        %v937 = vpop.f32.mrb[0].mxu0
        %v938 = vpop.f32.mrb[0].mxu0
        %v939 = vadd.f32 0.0, %v938
        %v940 = vpop.f32.mrb[0].mxu0
        %941 = vmatprep.mubr.bf16.mxu0 0
        %942 = vmatmul.mubr.bf16.gmra.mrb[0].mxu0 %v832
        %v943 = vpop.f32.mrb[0].mxu0
        %v944 = vadd.f32 0.0, %v943
        %v945 = vpop.f32.mrb[0].mxu0
        %v946 = vpop.f32.mrb[0].mxu0
        %v947 = vpop.f32.mrb[0].mxu0
        %948 = vdwg.mxu0
        %v949 = vadd.f32 %v754, %v872
        %v950 = vadd.f32 %v755, %v875
        %v951 = vadd.f32 %v756, %v880
        %v952 = vadd.f32 %v757, %v883
        %v953 = vadd.f32 %v758, %v888
        %v954 = vadd.f32 %v759, %v891
        %v955 = vadd.f32 %v760, %v896
        %v956 = vadd.f32 %v761, %v899
        %v957 = vadd.f32 %v762, %v904
        %v958 = vadd.f32 %v763, %v907
        %v959 = vadd.f32 %v764, %v912
        %v960 = vadd.f32 %v765, %v915
        %v961 = vadd.f32 %v766, %v920
        %v962 = vadd.f32 %v767, %v923
        %v963 = vadd.f32 %v768, %v928
        %v964 = vadd.f32 %v769, %v931
        %v965 = vadd.f32 %v770, %v936
        %v966 = vadd.f32 %v771, %v939
        %v967 = vadd.f32 %v772, %v944
        %v968 = vld [vmem:[%s194 + $0x4] sm:$0xff]
        %v969 = vld [vmem:[%s194 + $0xc] sm:$0xff]
        %v970 = vld [vmem:[%s194 + $0x14] sm:$0xff]
        %v971 = vld [vmem:[%s194 + $0x1c] sm:$0xff]
        %v972 = vld [vmem:[%s194 + $0x24] sm:$0xff]
        %v973 = vld [vmem:[%s194 + $0x2c] sm:$0xff]
        %v974 = vld [vmem:[%s194 + $0x34] sm:$0xff]
        %v975 = vld [vmem:[%s194 + $0x3c] sm:$0xff]
        %v976 = vld [vmem:[%s194 + $0x44] sm:$0xff]
        %v977 = vld [vmem:[%s194 + $0x4c] sm:$0xff]
        %v978 = vld [vmem:[%s194 + $0x54] sm:$0xff]
        %v979 = vld [vmem:[%s194 + $0x5c] sm:$0xff]
        %v980 = vld [vmem:[%s194 + $0x64] sm:$0xff]
        %v981 = vld [vmem:[%s194 + $0x6c] sm:$0xff]
        %v982 = vld [vmem:[%s194 + $0x74] sm:$0xff]
        %v983 = vld [vmem:[%s194 + $0x7c] sm:$0xff]
        %v984 = vld [vmem:[%s194 + $0x84] sm:$0xff]
        %v985 = vld [vmem:[%s194 + $0x8c] sm:$0xff]
        %v986 = vld [vmem:[%s194 + $0x94] sm:$0xff]
        %v987 = vpack.c.bf16 %v969, %v968
        %v988 = vpack.c.bf16 %v971, %v970
        %v989 = vpack.c.bf16 %v973, %v972
        %v990 = vpack.c.bf16 %v975, %v974
        %v991 = vpack.c.bf16 %v977, %v976
        %v992 = vpack.c.bf16 %v979, %v978
        %v993 = vpack.c.bf16 %v981, %v980
        %v994 = vpack.c.bf16 %v983, %v982
        %v995 = vpack.c.bf16 %v985, %v984
        %v996 = vpack.c.bf16 %v986, %v986
        %v997 = vld [vmem:[%s1 + $0x20] sm:$0xff]
        %v998 = vpack.c.bf16 %v997, %v997
        %v1000 = vsel %vm286, %v987, 0
        %v1003 = vsel %vm286, %v988, 0
        %v1006 = vsel %vm286, %v989, 0
        %v1009 = vsel %vm286, %v990, 0
        %v1012 = vsel %vm286, %v991, 0
        %v1015 = vsel %vm286, %v992, 0
        %v1018 = vsel %vm286, %v993, 0
        %v1021 = vsel %vm286, %v994, 0
        %v1024 = vsel %vm286, %v995, 0
        %v1027 = vsel %vm286, %v996, 0
        %v1030 = vsel %vm317, %v998, 0
        %1032 = vmatprep.subr.bf16.mxu0 0
        %1033 = vmatpush1.bf16.msra.mxu0 %v1030
        %1034 = vmatprep.subr.bf16.mxu0 0
        %1035 = vmatpush1.bf16.msra.mxu0 0
        %1036 = vmatprep.subr.bf16.mxu0 0
        %1037 = vmatpush1.bf16.msra.mxu0 0
        %1038 = vmatprep.subr.bf16.mxu0 0
        %1039 = vmatpush1.bf16.msra.mxu0 0
        %1040 = vmatprep.subr.bf16.mxu0 0
        %1041 = vmatpush1.bf16.msra.mxu0 0
        %1042 = vmatprep.subr.bf16.mxu0 0
        %1043 = vmatpush1.bf16.msra.mxu0 0
        %1044 = vmatprep.subr.bf16.mxu0 0
        %1045 = vmatpush1.bf16.msra.mxu0 0
        %1046 = vmatprep.subr.bf16.mxu0 0
        %1047 = vmatpush1.bf16.msra.mxu0 0
        %1048 = vmatprep.subr.bf16.mxu0 0
        %1049 = vmatpush1.bf16.msra.mxu0 0
        %1050 = vmatprep.subr.bf16.mxu0 0
        %1051 = vmatpush1.bf16.msra.mxu0 0
        %1052 = vmatprep.subr.bf16.mxu0 0
        %1053 = vmatpush1.bf16.msra.mxu0 0
        %1054 = vmatprep.subr.bf16.mxu0 0
        %1055 = vmatpush1.bf16.msra.mxu0 0
        %1056 = vmatprep.subr.bf16.mxu0 0
        %1057 = vmatpush1.bf16.msra.mxu0 0
        %1058 = vmatprep.subr.bf16.mxu0 0
        %1059 = vmatpush1.bf16.msra.mxu0 0
        %1060 = vmatprep.subr.bf16.mxu0 0
        %1061 = vmatpush1.bf16.msra.mxu0 0
        %1062 = vmatprep.subr.bf16.mxu0 0
        %1063 = vmatpush1.bf16.msra.mxu0 0
        %1064 = vmatprep.mubr.bf16.mxu0 0
        %1065 = vmatmul.mubr.bf16.gmra.mrb[0].mxu0 %v1000
        %v1066 = vpop.f32.mrb[0].mxu0
        %v1067 = vadd.f32 0.0, %v1066
        %v1068 = vpop.f32.mrb[0].mxu0
        %v1069 = vpop.f32.mrb[0].mxu0
        %v1070 = vadd.f32 0.0, %v1069
        %v1071 = vpop.f32.mrb[0].mxu0
        %1072 = vmatprep.mubr.bf16.mxu0 0
        %1073 = vmatmul.mubr.bf16.gmra.mrb[0].mxu0 %v1003
        %v1074 = vpop.f32.mrb[0].mxu0
        %v1075 = vadd.f32 0.0, %v1074
        %v1076 = vpop.f32.mrb[0].mxu0
        %v1077 = vpop.f32.mrb[0].mxu0
        %v1078 = vadd.f32 0.0, %v1077
        %v1079 = vpop.f32.mrb[0].mxu0
        %1080 = vmatprep.mubr.bf16.mxu0 0
        %1081 = vmatmul.mubr.bf16.gmra.mrb[0].mxu0 %v1006
        %v1082 = vpop.f32.mrb[0].mxu0
        %v1083 = vadd.f32 0.0, %v1082
        %v1084 = vpop.f32.mrb[0].mxu0
        %v1085 = vpop.f32.mrb[0].mxu0
        %v1086 = vadd.f32 0.0, %v1085
        %v1087 = vpop.f32.mrb[0].mxu0
        %1088 = vmatprep.mubr.bf16.mxu0 0
        %1089 = vmatmul.mubr.bf16.gmra.mrb[0].mxu0 %v1009
        %v1090 = vpop.f32.mrb[0].mxu0
        %v1091 = vadd.f32 0.0, %v1090
        %v1092 = vpop.f32.mrb[0].mxu0
        %v1093 = vpop.f32.mrb[0].mxu0
        %v1094 = vadd.f32 0.0, %v1093
        %v1095 = vpop.f32.mrb[0].mxu0
        %1096 = vmatprep.mubr.bf16.mxu0 0
        %1097 = vmatmul.mubr.bf16.gmra.mrb[0].mxu0 %v1012
        %v1098 = vpop.f32.mrb[0].mxu0
        %v1099 = vadd.f32 0.0, %v1098
        %v1100 = vpop.f32.mrb[0].mxu0
        %v1101 = vpop.f32.mrb[0].mxu0
        %v1102 = vadd.f32 0.0, %v1101
        %v1103 = vpop.f32.mrb[0].mxu0
        %1104 = vmatprep.mubr.bf16.mxu0 0
        %1105 = vmatmul.mubr.bf16.gmra.mrb[0].mxu0 %v1015
        %v1106 = vpop.f32.mrb[0].mxu0
        %v1107 = vadd.f32 0.0, %v1106
        %v1108 = vpop.f32.mrb[0].mxu0
        %v1109 = vpop.f32.mrb[0].mxu0
        %v1110 = vadd.f32 0.0, %v1109
        %v1111 = vpop.f32.mrb[0].mxu0
        %1112 = vmatprep.mubr.bf16.mxu0 0
        %1113 = vmatmul.mubr.bf16.gmra.mrb[0].mxu0 %v1018
        %v1114 = vpop.f32.mrb[0].mxu0
        %v1115 = vadd.f32 0.0, %v1114
        %v1116 = vpop.f32.mrb[0].mxu0
        %v1117 = vpop.f32.mrb[0].mxu0
        %v1118 = vadd.f32 0.0, %v1117
        %v1119 = vpop.f32.mrb[0].mxu0
        %1120 = vmatprep.mubr.bf16.mxu0 0
        %1121 = vmatmul.mubr.bf16.gmra.mrb[0].mxu0 %v1021
        %v1122 = vpop.f32.mrb[0].mxu0
        %v1123 = vadd.f32 0.0, %v1122
        %v1124 = vpop.f32.mrb[0].mxu0
        %v1125 = vpop.f32.mrb[0].mxu0
        %v1126 = vadd.f32 0.0, %v1125
        %v1127 = vpop.f32.mrb[0].mxu0
        %1128 = vmatprep.mubr.bf16.mxu0 0
        %1129 = vmatmul.mubr.bf16.gmra.mrb[0].mxu0 %v1024
        %v1130 = vpop.f32.mrb[0].mxu0
        %v1131 = vadd.f32 0.0, %v1130
        %v1132 = vpop.f32.mrb[0].mxu0
        %v1133 = vpop.f32.mrb[0].mxu0
        %v1134 = vadd.f32 0.0, %v1133
        %v1135 = vpop.f32.mrb[0].mxu0
        %1136 = vmatprep.mubr.bf16.mxu0 0
        %1137 = vmatmul.mubr.bf16.gmra.mrb[0].mxu0 %v1027
        %v1138 = vpop.f32.mrb[0].mxu0
        %v1139 = vadd.f32 0.0, %v1138
        %v1140 = vpop.f32.mrb[0].mxu0
        %v1141 = vpop.f32.mrb[0].mxu0
        %v1142 = vpop.f32.mrb[0].mxu0
        %1143 = vdwg.mxu0
        %v1144 = vadd.f32 %v949, %v1067
        %v1145 = vadd.f32 %v950, %v1070
        %v1146 = vadd.f32 %v951, %v1075
        %v1147 = vadd.f32 %v952, %v1078
        %v1148 = vadd.f32 %v953, %v1083
        %v1149 = vadd.f32 %v954, %v1086
        %v1150 = vadd.f32 %v955, %v1091
        %v1151 = vadd.f32 %v956, %v1094
        %v1152 = vadd.f32 %v957, %v1099
        %v1153 = vadd.f32 %v958, %v1102
        %v1154 = vadd.f32 %v959, %v1107
        %v1155 = vadd.f32 %v960, %v1110
        %v1156 = vadd.f32 %v961, %v1115
        %v1157 = vadd.f32 %v962, %v1118
        %v1158 = vadd.f32 %v963, %v1123
        %v1159 = vadd.f32 %v964, %v1126
        %v1160 = vadd.f32 %v965, %v1131
        %v1161 = vadd.f32 %v966, %v1134
        %v1162 = vadd.f32 %v967, %v1139
        %s1163 = smul.u32 %s19, 152
        %s1164 = scalar_lea.vmem [#allocation4], %s1163
        %1165 = vst [vmem:[%s1164] sm:$0xff] %v1144
        %1166 = vst [vmem:[%s1164 + $0x8] sm:$0xff] %v1145
        %1167 = vst [vmem:[%s1164 + $0x10] sm:$0xff] %v1146
        %1168 = vst [vmem:[%s1164 + $0x18] sm:$0xff] %v1147
        %1169 = vst [vmem:[%s1164 + $0x20] sm:$0xff] %v1148
        %1170 = vst [vmem:[%s1164 + $0x28] sm:$0xff] %v1149
        %1171 = vst [vmem:[%s1164 + $0x30] sm:$0xff] %v1150
        %1172 = vst [vmem:[%s1164 + $0x38] sm:$0xff] %v1151
        %1173 = vst [vmem:[%s1164 + $0x40] sm:$0xff] %v1152
        %1174 = vst [vmem:[%s1164 + $0x48] sm:$0xff] %v1153
        %1175 = vst [vmem:[%s1164 + $0x50] sm:$0xff] %v1154
        %1176 = vst [vmem:[%s1164 + $0x58] sm:$0xff] %v1155
        %1177 = vst [vmem:[%s1164 + $0x60] sm:$0xff] %v1156
        %1178 = vst [vmem:[%s1164 + $0x68] sm:$0xff] %v1157
        %1179 = vst [vmem:[%s1164 + $0x70] sm:$0xff] %v1158
        %1180 = vst [vmem:[%s1164 + $0x78] sm:$0xff] %v1159
        %1181 = vst [vmem:[%s1164 + $0x80] sm:$0xff] %v1160
        %1182 = vst [vmem:[%s1164 + $0x88] sm:$0xff] %v1161
        %1183 = vst [vmem:[%s1164 + $0x90] sm:$0xff] %v1162
        %v1184 = vlaneseq
        %v1185 = vshrl.u32 %v1184, 7
        %v1186 = vadd.s32 %v1185, 8
        %v1187 = vadd.s32 %v1185, 16
        %v1188 = vadd.s32 %v1185, 24
        %v1189 = vadd.s32 %v1185, 32
        %v1190 = vadd.s32 %v1185, 40
        %v1191 = vadd.s32 %v1185, 48
        %v1192 = vadd.s32 %v1185, 56
        %v1193 = vadd.s32 %v1185, 64
        %v1194 = vadd.s32 %v1185, 72
        %v1195 = vadd.s32 %v1185, 80
        %v1196 = vadd.s32 %v1185, 88
        %v1197 = vadd.s32 %v1185, 96
        %v1198 = vadd.s32 %v1185, 104
        %v1199 = vadd.s32 %v1185, 112
        %v1200 = vadd.s32 %v1185, 120
        %v1201 = vadd.s32 %v1185, 128
        %v1202 = vadd.s32 %v1185, 136
        %v1203 = vadd.s32 %v1185, 144
        %vm1204 = vcmp.lt.s32.totalorder %v1185, 0
        %v1205 = vsub.s32 0, %v1185
        %v1206 = vsel %vm1204, %v1205, %v1185
        %v1207 = vmul.u32.u64.compose %v1206, 3435973837
        %v1208 = vextract.low.u32 %v1207
        %v1209 = vextract.high.u32 %v1207
        %v1210 = vshrl.u32 %v1209, 5
        %v1211 = vmul.u32 %v1210, 40
        %v1212 = vsub.s32 %v1206, %v1211
        %v1213 = vsub.s32 0, %v1212
        %v1214 = vsel %vm1204, %v1213, %v1212
        %vm1215 = vcmp.lt.s32.totalorder %v1186, 0
        %v1216 = vsub.s32 0, %v1186
        %v1217 = vsel %vm1215, %v1216, %v1186
        %v1218 = vmul.u32.u64.compose %v1217, 3435973837
        %v1219 = vextract.low.u32 %v1218
        %v1220 = vextract.high.u32 %v1218
        %v1221 = vshrl.u32 %v1220, 5
        %v1222 = vmul.u32 %v1221, 40
        %v1223 = vsub.s32 %v1217, %v1222
        %v1224 = vsub.s32 0, %v1223
        %v1225 = vsel %vm1215, %v1224, %v1223
        %vm1226 = vcmp.lt.s32.totalorder %v1187, 0
        %v1227 = vsub.s32 0, %v1187
        %v1228 = vsel %vm1226, %v1227, %v1187
        %v1229 = vmul.u32.u64.compose %v1228, 3435973837
        %v1230 = vextract.low.u32 %v1229
        %v1231 = vextract.high.u32 %v1229
        %v1232 = vshrl.u32 %v1231, 5
        %v1233 = vmul.u32 %v1232, 40
        %v1234 = vsub.s32 %v1228, %v1233
        %v1235 = vsub.s32 0, %v1234
        %v1236 = vsel %vm1226, %v1235, %v1234
        %vm1237 = vcmp.lt.s32.totalorder %v1188, 0
        %v1238 = vsub.s32 0, %v1188
        %v1239 = vsel %vm1237, %v1238, %v1188
        %v1240 = vmul.u32.u64.compose %v1239, 3435973837
        %v1241 = vextract.low.u32 %v1240
        %v1242 = vextract.high.u32 %v1240
        %v1243 = vshrl.u32 %v1242, 5
        %v1244 = vmul.u32 %v1243, 40
        %v1245 = vsub.s32 %v1239, %v1244
        %v1246 = vsub.s32 0, %v1245
        %v1247 = vsel %vm1237, %v1246, %v1245
        %vm1248 = vcmp.lt.s32.totalorder %v1189, 0
        %v1249 = vsub.s32 0, %v1189
        %v1250 = vsel %vm1248, %v1249, %v1189
        %v1251 = vmul.u32.u64.compose %v1250, 3435973837
        %v1252 = vextract.low.u32 %v1251
        %v1253 = vextract.high.u32 %v1251
        %v1254 = vshrl.u32 %v1253, 5
        %v1255 = vmul.u32 %v1254, 40
        %v1256 = vsub.s32 %v1250, %v1255
        %v1257 = vsub.s32 0, %v1256
        %v1258 = vsel %vm1248, %v1257, %v1256
        %vm1259 = vcmp.lt.s32.totalorder %v1190, 0
        %v1260 = vsub.s32 0, %v1190
        %v1261 = vsel %vm1259, %v1260, %v1190
        %v1262 = vmul.u32.u64.compose %v1261, 3435973837
        %v1263 = vextract.low.u32 %v1262
        %v1264 = vextract.high.u32 %v1262
        %v1265 = vshrl.u32 %v1264, 5
        %v1266 = vmul.u32 %v1265, 40
        %v1267 = vsub.s32 %v1261, %v1266
        %v1268 = vsub.s32 0, %v1267
        %v1269 = vsel %vm1259, %v1268, %v1267
        %vm1270 = vcmp.lt.s32.totalorder %v1191, 0
        %v1271 = vsub.s32 0, %v1191
        %v1272 = vsel %vm1270, %v1271, %v1191
        %v1273 = vmul.u32.u64.compose %v1272, 3435973837
        %v1274 = vextract.low.u32 %v1273
        %v1275 = vextract.high.u32 %v1273
        %v1276 = vshrl.u32 %v1275, 5
        %v1277 = vmul.u32 %v1276, 40
        %v1278 = vsub.s32 %v1272, %v1277
        %v1279 = vsub.s32 0, %v1278
        %v1280 = vsel %vm1270, %v1279, %v1278
        %vm1281 = vcmp.lt.s32.totalorder %v1192, 0
        %v1282 = vsub.s32 0, %v1192
        %v1283 = vsel %vm1281, %v1282, %v1192
        %v1284 = vmul.u32.u64.compose %v1283, 3435973837
        %v1285 = vextract.low.u32 %v1284
        %v1286 = vextract.high.u32 %v1284
        %v1287 = vshrl.u32 %v1286, 5
        %v1288 = vmul.u32 %v1287, 40
        %v1289 = vsub.s32 %v1283, %v1288
        %v1290 = vsub.s32 0, %v1289
        %v1291 = vsel %vm1281, %v1290, %v1289
        %vm1292 = vcmp.lt.s32.totalorder %v1193, 0
        %v1293 = vsub.s32 0, %v1193
        %v1294 = vsel %vm1292, %v1293, %v1193
        %v1295 = vmul.u32.u64.compose %v1294, 3435973837
        %v1296 = vextract.low.u32 %v1295
        %v1297 = vextract.high.u32 %v1295
        %v1298 = vshrl.u32 %v1297, 5
        %v1299 = vmul.u32 %v1298, 40
        %v1300 = vsub.s32 %v1294, %v1299
        %v1301 = vsub.s32 0, %v1300
        %v1302 = vsel %vm1292, %v1301, %v1300
        %vm1303 = vcmp.lt.s32.totalorder %v1194, 0
        %v1304 = vsub.s32 0, %v1194
        %v1305 = vsel %vm1303, %v1304, %v1194
        %v1306 = vmul.u32.u64.compose %v1305, 3435973837
        %v1307 = vextract.low.u32 %v1306
        %v1308 = vextract.high.u32 %v1306
        %v1309 = vshrl.u32 %v1308, 5
        %v1310 = vmul.u32 %v1309, 40
        %v1311 = vsub.s32 %v1305, %v1310
        %v1312 = vsub.s32 0, %v1311
        %v1313 = vsel %vm1303, %v1312, %v1311
        %vm1314 = vcmp.lt.s32.totalorder %v1195, 0
        %v1315 = vsub.s32 0, %v1195
        %v1316 = vsel %vm1314, %v1315, %v1195
        %v1317 = vmul.u32.u64.compose %v1316, 3435973837
        %v1318 = vextract.low.u32 %v1317
        %v1319 = vextract.high.u32 %v1317
        %v1320 = vshrl.u32 %v1319, 5
        %v1321 = vmul.u32 %v1320, 40
        %v1322 = vsub.s32 %v1316, %v1321
        %v1323 = vsub.s32 0, %v1322
        %v1324 = vsel %vm1314, %v1323, %v1322
        %vm1325 = vcmp.lt.s32.totalorder %v1196, 0
        %v1326 = vsub.s32 0, %v1196
        %v1327 = vsel %vm1325, %v1326, %v1196
        %v1328 = vmul.u32.u64.compose %v1327, 3435973837
        %v1329 = vextract.low.u32 %v1328
        %v1330 = vextract.high.u32 %v1328
        %v1331 = vshrl.u32 %v1330, 5
        %v1332 = vmul.u32 %v1331, 40
        %v1333 = vsub.s32 %v1327, %v1332
        %v1334 = vsub.s32 0, %v1333
        %v1335 = vsel %vm1325, %v1334, %v1333
        %vm1336 = vcmp.lt.s32.totalorder %v1197, 0
        %v1337 = vsub.s32 0, %v1197
        %v1338 = vsel %vm1336, %v1337, %v1197
        %v1339 = vmul.u32.u64.compose %v1338, 3435973837
        %v1340 = vextract.low.u32 %v1339
        %v1341 = vextract.high.u32 %v1339
        %v1342 = vshrl.u32 %v1341, 5
        %v1343 = vmul.u32 %v1342, 40
        %v1344 = vsub.s32 %v1338, %v1343
        %v1345 = vsub.s32 0, %v1344
        %v1346 = vsel %vm1336, %v1345, %v1344
        %vm1347 = vcmp.lt.s32.totalorder %v1198, 0
        %v1348 = vsub.s32 0, %v1198
        %v1349 = vsel %vm1347, %v1348, %v1198
        %v1350 = vmul.u32.u64.compose %v1349, 3435973837
        %v1351 = vextract.low.u32 %v1350
        %v1352 = vextract.high.u32 %v1350
        %v1353 = vshrl.u32 %v1352, 5
        %v1354 = vmul.u32 %v1353, 40
        %v1355 = vsub.s32 %v1349, %v1354
        %v1356 = vsub.s32 0, %v1355
        %v1357 = vsel %vm1347, %v1356, %v1355
        %vm1358 = vcmp.lt.s32.totalorder %v1199, 0
        %v1359 = vsub.s32 0, %v1199
        %v1360 = vsel %vm1358, %v1359, %v1199
        %v1361 = vmul.u32.u64.compose %v1360, 3435973837
        %v1362 = vextract.low.u32 %v1361
        %v1363 = vextract.high.u32 %v1361
        %v1364 = vshrl.u32 %v1363, 5
        %v1365 = vmul.u32 %v1364, 40
        %v1366 = vsub.s32 %v1360, %v1365
        %v1367 = vsub.s32 0, %v1366
        %v1368 = vsel %vm1358, %v1367, %v1366
        %vm1369 = vcmp.lt.s32.totalorder %v1200, 0
        %v1370 = vsub.s32 0, %v1200
        %v1371 = vsel %vm1369, %v1370, %v1200
        %v1372 = vmul.u32.u64.compose %v1371, 3435973837
        %v1373 = vextract.low.u32 %v1372
        %v1374 = vextract.high.u32 %v1372
        %v1375 = vshrl.u32 %v1374, 5
        %v1376 = vmul.u32 %v1375, 40
        %v1377 = vsub.s32 %v1371, %v1376
        %v1378 = vsub.s32 0, %v1377
        %v1379 = vsel %vm1369, %v1378, %v1377
        %vm1380 = vcmp.lt.s32.totalorder %v1201, 0
        %v1381 = vsub.s32 0, %v1201
        %v1382 = vsel %vm1380, %v1381, %v1201
        %v1383 = vmul.u32.u64.compose %v1382, 3435973837
        %v1384 = vextract.low.u32 %v1383
        %v1385 = vextract.high.u32 %v1383
        %v1386 = vshrl.u32 %v1385, 5
        %v1387 = vmul.u32 %v1386, 40
        %v1388 = vsub.s32 %v1382, %v1387
        %v1389 = vsub.s32 0, %v1388
        %v1390 = vsel %vm1380, %v1389, %v1388
        %vm1391 = vcmp.lt.s32.totalorder %v1202, 0
        %v1392 = vsub.s32 0, %v1202
        %v1393 = vsel %vm1391, %v1392, %v1202
        %v1394 = vmul.u32.u64.compose %v1393, 3435973837
        %v1395 = vextract.low.u32 %v1394
        %v1396 = vextract.high.u32 %v1394
        %v1397 = vshrl.u32 %v1396, 5
        %v1398 = vmul.u32 %v1397, 40
        %v1399 = vsub.s32 %v1393, %v1398
        %v1400 = vsub.s32 0, %v1399
        %v1401 = vsel %vm1391, %v1400, %v1399
        %vm1402 = vcmp.lt.s32.totalorder %v1203, 0
        %v1403 = vsub.s32 0, %v1203
        %v1404 = vsel %vm1402, %v1403, %v1203
        %v1405 = vmul.u32.u64.compose %v1404, 3435973837
        %v1406 = vextract.low.u32 %v1405
        %v1407 = vextract.high.u32 %v1405
        %v1408 = vshrl.u32 %v1407, 5
        %v1409 = vmul.u32 %v1408, 40
        %v1410 = vsub.s32 %v1404, %v1409
        %v1411 = vsub.s32 0, %v1410
        %v1412 = vsel %vm1402, %v1411, %v1410
        %vm1413 = vcmp.ne.s32.totalorder %v1214, 0
        %vm1414 = vcmp.ne.s32.totalorder %v1225, 0
        %vm1415 = vcmp.ne.s32.totalorder %v1236, 0
        %vm1416 = vcmp.ne.s32.totalorder %v1247, 0
        %vm1417 = vcmp.ne.s32.totalorder %v1258, 0
        %vm1418 = vcmp.ne.s32.totalorder %v1269, 0
        %vm1419 = vcmp.ne.s32.totalorder %v1280, 0
        %vm1420 = vcmp.ne.s32.totalorder %v1291, 0
        %vm1421 = vcmp.ne.s32.totalorder %v1302, 0
        %vm1422 = vcmp.ne.s32.totalorder %v1313, 0
        %vm1423 = vcmp.ne.s32.totalorder %v1324, 0
        %vm1424 = vcmp.ne.s32.totalorder %v1335, 0
        %vm1425 = vcmp.ne.s32.totalorder %v1346, 0
        %vm1426 = vcmp.ne.s32.totalorder %v1357, 0
        %vm1427 = vcmp.ne.s32.totalorder %v1368, 0
        %vm1428 = vcmp.ne.s32.totalorder %v1379, 0
        %vm1429 = vcmp.ne.s32.totalorder %v1390, 0
        %vm1430 = vcmp.ne.s32.totalorder %v1401, 0
        %vm1431 = vcmp.ne.s32.totalorder %v1412, 0
        %vm1432 = vcmp.lt.s32.totalorder %v1214, 0
        %vm1433 = vcmp.lt.s32.totalorder %v1225, 0
        %vm1434 = vcmp.lt.s32.totalorder %v1236, 0
        %vm1435 = vcmp.lt.s32.totalorder %v1247, 0
        %vm1436 = vcmp.lt.s32.totalorder %v1258, 0
        %vm1437 = vcmp.lt.s32.totalorder %v1269, 0
        %vm1438 = vcmp.lt.s32.totalorder %v1280, 0
        %vm1439 = vcmp.lt.s32.totalorder %v1291, 0
        %vm1440 = vcmp.lt.s32.totalorder %v1302, 0
        %vm1441 = vcmp.lt.s32.totalorder %v1313, 0
        %vm1442 = vcmp.lt.s32.totalorder %v1324, 0
        %vm1443 = vcmp.lt.s32.totalorder %v1335, 0
        %vm1444 = vcmp.lt.s32.totalorder %v1346, 0
        %vm1445 = vcmp.lt.s32.totalorder %v1357, 0
        %vm1446 = vcmp.lt.s32.totalorder %v1368, 0
        %vm1447 = vcmp.lt.s32.totalorder %v1379, 0
        %vm1448 = vcmp.lt.s32.totalorder %v1390, 0
        %vm1449 = vcmp.lt.s32.totalorder %v1401, 0
        %vm1450 = vcmp.lt.s32.totalorder %v1412, 0
        %vm1451 = vmand %vm1432, %vm1413
        %vm1452 = vmand %vm1433, %vm1414
        %vm1453 = vmand %vm1434, %vm1415
        %vm1454 = vmand %vm1435, %vm1416
        %vm1455 = vmand %vm1436, %vm1417
        %vm1456 = vmand %vm1437, %vm1418
        %vm1457 = vmand %vm1438, %vm1419
        %vm1458 = vmand %vm1439, %vm1420
        %vm1459 = vmand %vm1440, %vm1421
        %vm1460 = vmand %vm1441, %vm1422
        %vm1461 = vmand %vm1442, %vm1423
        %vm1462 = vmand %vm1443, %vm1424
        %vm1463 = vmand %vm1444, %vm1425
        %vm1464 = vmand %vm1445, %vm1426
        %vm1465 = vmand %vm1446, %vm1427
        %vm1466 = vmand %vm1447, %vm1428
        %vm1467 = vmand %vm1448, %vm1429
        %vm1468 = vmand %vm1449, %vm1430
        %vm1469 = vmand %vm1450, %vm1431
        %v1470 = vadd.s32 %v1214, 40
        %v1471 = vadd.s32 %v1225, 40
        %v1472 = vadd.s32 %v1236, 40
        %v1473 = vadd.s32 %v1247, 40
        %v1474 = vadd.s32 %v1258, 40
        %v1475 = vadd.s32 %v1269, 40
        %v1476 = vadd.s32 %v1280, 40
        %v1477 = vadd.s32 %v1291, 40
        %v1478 = vadd.s32 %v1302, 40
        %v1479 = vadd.s32 %v1313, 40
        %v1480 = vadd.s32 %v1324, 40
        %v1481 = vadd.s32 %v1335, 40
        %v1482 = vadd.s32 %v1346, 40
        %v1483 = vadd.s32 %v1357, 40
        %v1484 = vadd.s32 %v1368, 40
        %v1485 = vadd.s32 %v1379, 40
        %v1486 = vadd.s32 %v1390, 40
        %v1487 = vadd.s32 %v1401, 40
        %v1488 = vadd.s32 %v1412, 40
        %v1489 = vsel %vm1451, %v1470, %v1214
        %v1490 = vsel %vm1452, %v1471, %v1225
        %v1491 = vsel %vm1453, %v1472, %v1236
        %v1492 = vsel %vm1454, %v1473, %v1247
        %v1493 = vsel %vm1455, %v1474, %v1258
        %v1494 = vsel %vm1456, %v1475, %v1269
        %v1495 = vsel %vm1457, %v1476, %v1280
        %v1496 = vsel %vm1458, %v1477, %v1291
        %v1497 = vsel %vm1459, %v1478, %v1302
        %v1498 = vsel %vm1460, %v1479, %v1313
        %v1499 = vsel %vm1461, %v1480, %v1324
        %v1500 = vsel %vm1462, %v1481, %v1335
        %v1501 = vsel %vm1463, %v1482, %v1346
        %v1502 = vsel %vm1464, %v1483, %v1357
        %v1503 = vsel %vm1465, %v1484, %v1368
        %v1504 = vsel %vm1466, %v1485, %v1379
        %v1505 = vsel %vm1467, %v1486, %v1390
        %v1506 = vsel %vm1468, %v1487, %v1401
        %v1507 = vsel %vm1469, %v1488, %v1412
        %vm1508 = vcmp.lt.s32.totalorder %v1489, 32
        %vm1509 = vcmp.lt.s32.totalorder %v1490, 32
        %vm1510 = vcmp.lt.s32.totalorder %v1491, 32
        %vm1511 = vcmp.lt.s32.totalorder %v1492, 32
        %vm1512 = vcmp.lt.s32.totalorder %v1493, 32
        %vm1513 = vcmp.lt.s32.totalorder %v1494, 32
        %vm1514 = vcmp.lt.s32.totalorder %v1495, 32
        %vm1515 = vcmp.lt.s32.totalorder %v1496, 32
        %vm1516 = vcmp.lt.s32.totalorder %v1497, 32
        %vm1517 = vcmp.lt.s32.totalorder %v1498, 32
        %vm1518 = vcmp.lt.s32.totalorder %v1499, 32
        %vm1519 = vcmp.lt.s32.totalorder %v1500, 32
        %vm1520 = vcmp.lt.s32.totalorder %v1501, 32
        %vm1521 = vcmp.lt.s32.totalorder %v1502, 32
        %vm1522 = vcmp.lt.s32.totalorder %v1503, 32
        %vm1523 = vcmp.lt.s32.totalorder %v1504, 32
        %vm1524 = vcmp.lt.s32.totalorder %v1505, 32
        %vm1525 = vcmp.lt.s32.totalorder %v1506, 32
        %vm1526 = vcmp.lt.s32.totalorder %v1507, 32
        %v1527 = vsel %vm1508, %v1144, 0.0
        %v1528 = vsel %vm1509, %v1145, 0.0
        %v1529 = vsel %vm1510, %v1146, 0.0
        %v1530 = vsel %vm1511, %v1147, 0.0
        %v1531 = vsel %vm1512, %v1148, 0.0
        %v1532 = vsel %vm1513, %v1149, 0.0
        %v1533 = vsel %vm1514, %v1150, 0.0
        %v1534 = vsel %vm1515, %v1151, 0.0
        %v1535 = vsel %vm1516, %v1152, 0.0
        %v1536 = vsel %vm1517, %v1153, 0.0
        %v1537 = vsel %vm1518, %v1154, 0.0
        %v1538 = vsel %vm1519, %v1155, 0.0
        %v1539 = vsel %vm1520, %v1156, 0.0
        %v1540 = vsel %vm1521, %v1157, 0.0
        %v1541 = vsel %vm1522, %v1158, 0.0
        %v1542 = vsel %vm1523, %v1159, 0.0
        %v1543 = vsel %vm1524, %v1160, 0.0
        %v1544 = vsel %vm1525, %v1161, 0.0
        %v1545 = vsel %vm1526, %v1162, 0.0
        %v1546 = vld [vmem:[#allocation2] sm:$0x1]
        %v1547 = vadd.f32 %v1527, %v1528
        %v1548 = vadd.f32 %v1547, %v1529
        %v1549 = vadd.f32 %v1548, %v1530
        %v1550 = vadd.f32 %v1549, %v1531
        %v1551 = vadd.f32 %v1550, %v1532
        %v1552 = vadd.f32 %v1551, %v1533
        %v1553 = vadd.f32 %v1552, %v1534
        %v1554 = vadd.f32 %v1553, %v1535
        %v1555 = vadd.f32 %v1554, %v1536
        %v1556 = vadd.f32 %v1555, %v1537
        %v1557 = vadd.f32 %v1556, %v1538
        %v1558 = vadd.f32 %v1557, %v1539
        %v1559 = vadd.f32 %v1558, %v1540
        %v1560 = vadd.f32 %v1559, %v1541
        %v1561 = vadd.f32 %v1560, %v1542
        %v1562 = vadd.f32 %v1561, %v1543
        %v1563 = vadd.f32 %v1562, %v1544
        %v1564 = vadd.f32 %v1563, %v1545
        %v1565 = vrot.slane %v1564, 4
        %v1566 = vadd.f32 %v1564, %v1565
        %v1567 = vrot.slane %v1566, 2
        %v1568 = vadd.f32 %v1566, %v1567
        %v1569 = vrot.slane %v1568, 1
        %v1570 = vadd.f32 %v1568, %v1569
        %v1571 = vadd.f32 %v1546, %v1570
        %1572 = vst [vmem:[#allocation2] sm:$0x1] %v1571
        %v1573 = vld [vmem:[#allocation2 + $0x1] sm:$0x1]
        %v1574 = vmul.f32 %v1527, %v1527
        %v1575 = vmul.f32 %v1528, %v1528
        %v1576 = vmul.f32 %v1529, %v1529
        %v1577 = vmul.f32 %v1530, %v1530
        %v1578 = vmul.f32 %v1531, %v1531
        %v1579 = vmul.f32 %v1532, %v1532
        %v1580 = vmul.f32 %v1533, %v1533
        %v1581 = vmul.f32 %v1534, %v1534
        %v1582 = vmul.f32 %v1535, %v1535
        %v1583 = vmul.f32 %v1536, %v1536
        %v1584 = vmul.f32 %v1537, %v1537
        %v1585 = vmul.f32 %v1538, %v1538
        %v1586 = vmul.f32 %v1539, %v1539
        %v1587 = vmul.f32 %v1540, %v1540
        %v1588 = vmul.f32 %v1541, %v1541
        %v1589 = vmul.f32 %v1542, %v1542
        %v1590 = vmul.f32 %v1543, %v1543
        %v1591 = vmul.f32 %v1544, %v1544
        %v1592 = vmul.f32 %v1545, %v1545
        %v1593 = vadd.f32 %v1574, %v1575
        %v1594 = vadd.f32 %v1593, %v1576
        %v1595 = vadd.f32 %v1594, %v1577
        %v1596 = vadd.f32 %v1595, %v1578
        %v1597 = vadd.f32 %v1596, %v1579
        %v1598 = vadd.f32 %v1597, %v1580
        %v1599 = vadd.f32 %v1598, %v1581
        %v1600 = vadd.f32 %v1599, %v1582
        %v1601 = vadd.f32 %v1600, %v1583
        %v1602 = vadd.f32 %v1601, %v1584
        %v1603 = vadd.f32 %v1602, %v1585
        %v1604 = vadd.f32 %v1603, %v1586
        %v1605 = vadd.f32 %v1604, %v1587
        %v1606 = vadd.f32 %v1605, %v1588
        %v1607 = vadd.f32 %v1606, %v1589
        %v1608 = vadd.f32 %v1607, %v1590
        %v1609 = vadd.f32 %v1608, %v1591
        %v1610 = vadd.f32 %v1609, %v1592
        %v1611 = vrot.slane %v1610, 4
        %v1612 = vadd.f32 %v1610, %v1611
        %v1613 = vrot.slane %v1612, 2
        %v1614 = vadd.f32 %v1612, %v1613
        %v1615 = vrot.slane %v1614, 1
        %v1616 = vadd.f32 %v1614, %v1615
        %v1617 = vadd.f32 %v1573, %v1616
        %1618 = vst [vmem:[#allocation2 + $0x1] sm:$0x1] %v1617
      $region40: #{my_conv1d_forward.1} parent=31 // pred_fallthru
        _
      %p1619 = scmp.eq.s32.totalorder %s18, 1
      %p1620 = pnand %p1619, %p209
      %p1621 = pneg %p1620
      // Predicated region
      $region41: #{my_conv1d_forward.1} parent=31 // pred_check
        _
      $region42: #{my_conv1d_forward.1} parent=31 // pred_check_branch
        %1623 = sbr.rel (%p1620) target = $region44
      $region43: #{my_conv1d_forward.1} parent=31 // pred_region
        %v1624 = vld [vmem:[#allocation2] sm:$0x1]
        %v1625 = vmul.f32 %v1624, 0.0078125
        %v1626 = vld [vmem:[#allocation2 + $0x1] sm:$0x1]
        %v1627 = vmul.f32 %v1626, 0.0078125
        %v1628 = vmul.f32 %v1625, %v1625
        %v1629 = vsub.f32 %v1627, %v1628
        %v1630 = vld [vmem:[%s2] sm:$0x1]
        %v1631 = vadd.f32 %v1629, 1e-05
        %v1632 = vrsqrt.pop %v1631
        %v1633 = vmul.f32 %v1630, %v1632
        %v1634 = vld [vmem:[%s2 + $0x1] sm:$0x1]
        %v1635 = vmul.f32 %v1625, %v1633
        %v1636 = vsub.f32 %v1634, %v1635
        %1637 = vst [vmem:[#allocation2 + $0x1] sm:$0x1] %v1636
        %1638 = vst [vmem:[#allocation2] sm:$0x1] %v1633
      $region44: #{my_conv1d_forward.1} parent=31 // pred_fallthru
        _
      // Predicated region
      $region45: #{my_conv1d_forward.1} parent=31 // pred_check
        %p1639 = pneg %p1619
      $region46: #{my_conv1d_forward.1} parent=31 // pred_check_branch
        %1641 = sbr.rel (%p1639) target = $region48
      $region47: #{my_conv1d_forward.1} parent=31 // pred_region
        %s1642 = smul.u32 %s19, 152
        %s1643 = scalar_lea.vmem [#allocation4], %s1642
        %v1644 = vld [vmem:[%s1643] sm:$0xff]
        %v1645 = vld [vmem:[%s1643 + $0x8] sm:$0xff]
        %v1646 = vld [vmem:[%s1643 + $0x10] sm:$0xff]
        %v1647 = vld [vmem:[%s1643 + $0x18] sm:$0xff]
        %v1648 = vld [vmem:[%s1643 + $0x28] sm:$0xff]
        %v1649 = vld [vmem:[%s1643 + $0x30] sm:$0xff]
        %v1650 = vld [vmem:[%s1643 + $0x38] sm:$0xff]
        %v1651 = vld [vmem:[%s1643 + $0x40] sm:$0xff]
        %v1652 = vld [vmem:[%s1643 + $0x50] sm:$0xff]
        %v1653 = vld [vmem:[%s1643 + $0x58] sm:$0xff]
        %v1654 = vld [vmem:[%s1643 + $0x60] sm:$0xff]
        %v1655 = vld [vmem:[%s1643 + $0x68] sm:$0xff]
        %v1656 = vld [vmem:[%s1643 + $0x78] sm:$0xff]
        %v1657 = vld [vmem:[%s1643 + $0x80] sm:$0xff]
        %v1658 = vld [vmem:[%s1643 + $0x88] sm:$0xff]
        %v1659 = vld [vmem:[%s1643 + $0x90] sm:$0xff]
        %v1660 = vld [vmem:[#allocation2] sm:$0x1]
        %v1661 = vld [vmem:[#allocation2 + $0x1] sm:$0x1]
        %v1662 = vlaneseq
        %v1663 = vshrl.u32 %v1662, 7
        %v1664 = vsub.s32 0, %v1663
        %v1665 = vrot.slane %v1660, %v1664
        %v1666 = vmul.f32 %v1644, %v1665
        %v1667 = vmul.f32 %v1645, %v1665
        %v1668 = vmul.f32 %v1646, %v1665
        %v1669 = vmul.f32 %v1647, %v1665
        %v1670 = vmul.f32 %v1648, %v1665
        %v1671 = vmul.f32 %v1649, %v1665
        %v1672 = vmul.f32 %v1650, %v1665
        %v1673 = vmul.f32 %v1651, %v1665
        %v1674 = vmul.f32 %v1652, %v1665
        %v1675 = vmul.f32 %v1653, %v1665
        %v1676 = vmul.f32 %v1654, %v1665
        %v1677 = vmul.f32 %v1655, %v1665
        %v1678 = vmul.f32 %v1656, %v1665
        %v1679 = vmul.f32 %v1657, %v1665
        %v1680 = vmul.f32 %v1658, %v1665
        %v1681 = vmul.f32 %v1659, %v1665
        %v1682 = vlaneseq
        %v1683 = vshrl.u32 %v1682, 7
        %v1684 = vsub.s32 0, %v1683
        %v1685 = vrot.slane %v1661, %v1684
        %v1686 = vadd.f32 %v1666, %v1685
        %v1687 = vadd.f32 %v1667, %v1685
        %v1688 = vadd.f32 %v1668, %v1685
        %v1689 = vadd.f32 %v1669, %v1685
        %v1690 = vadd.f32 %v1670, %v1685
        %v1691 = vadd.f32 %v1671, %v1685
        %v1692 = vadd.f32 %v1672, %v1685
        %v1693 = vadd.f32 %v1673, %v1685
        %v1694 = vadd.f32 %v1674, %v1685
        %v1695 = vadd.f32 %v1675, %v1685
        %v1696 = vadd.f32 %v1676, %v1685
        %v1697 = vadd.f32 %v1677, %v1685
        %v1698 = vadd.f32 %v1678, %v1685
        %v1699 = vadd.f32 %v1679, %v1685
        %v1700 = vadd.f32 %v1680, %v1685
        %v1701 = vadd.f32 %v1681, %v1685
        %v1702 = vmax.f32 %v1686, 0.0
        %v1703 = vmax.f32 %v1687, 0.0
        %v1704 = vmax.f32 %v1688, 0.0
        %v1705 = vmax.f32 %v1689, 0.0
        %v1706 = vmax.f32 %v1690, 0.0
        %v1707 = vmax.f32 %v1691, 0.0
        %v1708 = vmax.f32 %v1692, 0.0
        %v1709 = vmax.f32 %v1693, 0.0
        %v1710 = vmax.f32 %v1694, 0.0
        %v1711 = vmax.f32 %v1695, 0.0
        %v1712 = vmax.f32 %v1696, 0.0
        %v1713 = vmax.f32 %v1697, 0.0
        %v1714 = vmax.f32 %v1698, 0.0
        %v1715 = vmax.f32 %v1699, 0.0
        %v1716 = vmax.f32 %v1700, 0.0
        %v1717 = vmax.f32 %v1701, 0.0
        %1718 = vst [vmem:[#allocation3] sm:$0xff] %v1702
        %1719 = vst [vmem:[#allocation3 + $0x8] sm:$0xff] %v1703
        %1720 = vst [vmem:[#allocation3 + $0x10] sm:$0xff] %v1704
        %1721 = vst [vmem:[#allocation3 + $0x18] sm:$0xff] %v1705
        %v1722 = vld [vmem:[#allocation3] ss:$3 sm:$0xff]
        %s1723 = scalar_lea.vmem [#allocation3], 24
        %v1724 = vld [vmem:[%s1723] ss:$3 sm:$0xff]
        %s1725 = scalar_lea.vmem [#allocation3], 1
        %v1726 = vld [vmem:[%s1725] ss:$3 sm:$0xff]
        %s1727 = scalar_lea.vmem [#allocation3], 25
        %v1728 = vld [vmem:[%s1727] ss:$3 sm:$0xff]
        %v1729 = vmax.f32 %v1722, %v1726
        %v1730 = vmax.f32 %v1724, %v1728
        %s1731 = scalar_lea.vmem [#allocation3], 2
        %v1732 = vld [vmem:[%s1731] ss:$3 sm:$0xff]
        %s1733 = scalar_lea.vmem [#allocation3], 26
        %v1734 = vld [vmem:[%s1733] ss:$3 sm:$0xff]
        %v1735 = vmax.f32 %v1729, %v1732
        %v1736 = vmax.f32 %v1730, %v1734
        %v1737 = vpack.c.bf16 %v1736, %v1735
        %v1739 = vunpack.c.l.b16 %v1737
        %v1740 = vunpack.c.h.b16 %v1737
        %v1741 = vpack.c.b16 %v1739, %v1739
        %v1742 = vpack.c.b16 %v1740, %v1740
        %1745 = vst [vmem:[%s204] sm:$0xf] %v1741
        %1746 = vst [vmem:[%s204 + $0x4] sm:$0xf] %v1742
        %1747 = vst [vmem:[#allocation3] sm:$0xff] %v1706
        %1748 = vst [vmem:[#allocation3 + $0x8] sm:$0xff] %v1707
        %1749 = vst [vmem:[#allocation3 + $0x10] sm:$0xff] %v1708
        %1750 = vst [vmem:[#allocation3 + $0x18] sm:$0xff] %v1709
        %v1751 = vld [vmem:[#allocation3] ss:$3 sm:$0xff]
        %v1752 = vld [vmem:[%s1723] ss:$3 sm:$0xff]
        %v1753 = vld [vmem:[%s1725] ss:$3 sm:$0xff]
        %v1754 = vld [vmem:[%s1727] ss:$3 sm:$0xff]
        %v1755 = vmax.f32 %v1751, %v1753
        %v1756 = vmax.f32 %v1752, %v1754
        %v1757 = vld [vmem:[%s1731] ss:$3 sm:$0xff]
        %v1758 = vld [vmem:[%s1733] ss:$3 sm:$0xff]
        %v1759 = vmax.f32 %v1755, %v1757
        %v1760 = vmax.f32 %v1756, %v1758
        %v1761 = vpack.c.bf16 %v1760, %v1759
        %v1763 = vunpack.c.l.b16 %v1761
        %v1764 = vunpack.c.h.b16 %v1761
        %v1765 = vpack.c.b16 %v1763, %v1763
        %v1766 = vpack.c.b16 %v1764, %v1764
        %s1769 = scalar_lea.vmem %s204, 8
        %1770 = vst [vmem:[%s1769] sm:$0xf] %v1765
        %1771 = vst [vmem:[%s1769 + $0x4] sm:$0xf] %v1766
        %1772 = vst [vmem:[#allocation3] sm:$0xff] %v1710
        %1773 = vst [vmem:[#allocation3 + $0x8] sm:$0xff] %v1711
        %1774 = vst [vmem:[#allocation3 + $0x10] sm:$0xff] %v1712
        %1775 = vst [vmem:[#allocation3 + $0x18] sm:$0xff] %v1713
        %v1776 = vld [vmem:[#allocation3] ss:$3 sm:$0xff]
        %v1777 = vld [vmem:[%s1723] ss:$3 sm:$0xff]
        %v1778 = vld [vmem:[%s1725] ss:$3 sm:$0xff]
        %v1779 = vld [vmem:[%s1727] ss:$3 sm:$0xff]
        %v1780 = vmax.f32 %v1776, %v1778
        %v1781 = vmax.f32 %v1777, %v1779
        %v1782 = vld [vmem:[%s1731] ss:$3 sm:$0xff]
        %v1783 = vld [vmem:[%s1733] ss:$3 sm:$0xff]
        %v1784 = vmax.f32 %v1780, %v1782
        %v1785 = vmax.f32 %v1781, %v1783
        %v1786 = vpack.c.bf16 %v1785, %v1784
        %v1788 = vunpack.c.l.b16 %v1786
        %v1789 = vunpack.c.h.b16 %v1786
        %v1790 = vpack.c.b16 %v1788, %v1788
        %v1791 = vpack.c.b16 %v1789, %v1789
        %s1794 = scalar_lea.vmem %s204, 16
        %1795 = vst [vmem:[%s1794] sm:$0xf] %v1790
        %1796 = vst [vmem:[%s1794 + $0x4] sm:$0xf] %v1791
        %1797 = vst [vmem:[#allocation3] sm:$0xff] %v1714
        %1798 = vst [vmem:[#allocation3 + $0x8] sm:$0xff] %v1715
        %1799 = vst [vmem:[#allocation3 + $0x10] sm:$0xff] %v1716
        %1800 = vst [vmem:[#allocation3 + $0x18] sm:$0xff] %v1717
        %v1801 = vld [vmem:[#allocation3] ss:$3 sm:$0xff]
        %v1802 = vld [vmem:[%s1723] ss:$3 sm:$0xff]
        %v1803 = vld [vmem:[%s1725] ss:$3 sm:$0xff]
        %v1804 = vld [vmem:[%s1727] ss:$3 sm:$0xff]
        %v1805 = vmax.f32 %v1801, %v1803
        %v1806 = vmax.f32 %v1802, %v1804
        %v1807 = vld [vmem:[%s1731] ss:$3 sm:$0xff]
        %v1808 = vld [vmem:[%s1733] ss:$3 sm:$0xff]
        %v1809 = vmax.f32 %v1805, %v1807
        %v1810 = vmax.f32 %v1806, %v1808
        %v1811 = vpack.c.bf16 %v1810, %v1809
        %v1813 = vunpack.c.l.b16 %v1811
        %v1814 = vunpack.c.h.b16 %v1811
        %v1815 = vpack.c.b16 %v1813, %v1813
        %v1816 = vpack.c.b16 %v1814, %v1814
        %s1819 = scalar_lea.vmem %s204, 24
        %1820 = vst [vmem:[%s1819] sm:$0xf] %v1815
        %1821 = vst [vmem:[%s1819 + $0x4] sm:$0xf] %v1816
      $region48: #{my_conv1d_forward.1} parent=31 // pred_fallthru
        _
      %s1822 = smul.u32 %s18, %s19
      %s1823 = smul.u32 4, %s1822
      %p1824 = scmp.lt.s32.totalorder %s1823, 3
      %s1825 = scalar_select %p1824, %s1823, 3
      %s1826 = smul.addr %s1825, 2
      %s1827 = smul.addr %s1826, 4
      %s1828 = scalar_lea.vmem %s3, %s1827
      // Predicated region
      $region49: #{my_conv1d_forward.1} parent=31 // pred_check
        %p1829 = pneg %p118
      $region50: #{my_conv1d_forward.1} parent=31 // pred_check_branch
        %1831 = sbr.rel (%p1829) target = $region52
      $region51: #{my_conv1d_forward.1} parent=31 // pred_region
        %s1832 = smul.u32 %s18, %s19
        %s1833 = smul.u32 4, %s1832
      $region52: #{my_conv1d_forward.1} parent=31 // pred_fallthru
        _
    $region32: #{my_conv1d_forward.1} parent=5 // pred_fallthru
      _
    %p1834 = scmp.le.s32.totalorder 2, %s9
    // Predicated region
    $region53: #{my_conv1d_forward.1} parent=5 // pred_check
      %p1835 = pneg %p1834
    $region54: #{my_conv1d_forward.1} parent=5 // pred_check_branch
      %1837 = sbr.rel (%p1835) target = $region56
    $region55: #{my_conv1d_forward.1} parent=5 // pred_region
      %s1838 = ssub.s32 %s9, 2
      // Predicated region
      $region57: #{my_conv1d_forward.1} parent=55 // pred_check
        %p1839 = pneg %p124
      $region58: #{my_conv1d_forward.1} parent=55 // pred_check_branch
        %1841 = sbr.rel (%p1839) target = $region60
      $region59: #{my_conv1d_forward.1} parent=55 // pred_region
        %s1842 = smul.u32 %s20, %s21
        %s1843 = smul.u32 4, %s1842
        %p1844 = scmp.lt.s32.totalorder %s1843, 3
        %s1845 = scalar_select %p1844, %s1843, 3
        %s1846 = smul.addr %s1845, 2
        %s1847 = smul.addr %s1846, 4
        %s1848 = scalar_lea.vmem %s3, %s1847
      $region60: #{my_conv1d_forward.1} parent=55 // pred_fallthru
        _
    $region56: #{my_conv1d_forward.1} parent=5 // pred_fallthru
      _
  $region6: #{my_conv1d_forward.1} parent=0 // loop_footer
    %s13 = sadd.s32 1, %s9
  $region7: #{my_conv1d_forward.1} parent=0 // loop_footer_branch
    %8 = sbr.rel target = $region3
  $region8: #{my_conv1d_forward.1} parent=0 // loop_exit
    _

</llo_original>
